<compile_context>
chip_gen: v6e
topology: v6e:2x2x1
jax: 0.10.0
libtpu: 0.0.40
codegen_flags: <defaults>
</compile_context>

<pallas_src>
import functools

import jax
import jax.numpy as jnp
from jax import lax
from jax.experimental import pallas as pl
from jax.experimental.pallas import tpu as pltpu


def wavenet_kernel(x_ref,                         # (1, Cin, TT) f32
                   w_in_ref, b_in_ref,            # (K, res, Cin) bf16, (res, 1) f32
                   w_rs_ref, b_rs_ref,            # (skip, res) bf16, (skip, 1) f32
                   w_g_ref, b_g_ref,              # (L, Kg, 2*hid, res) bf16, (L, 2*hid, 1) f32
                   w_sr_ref,                      # (L, skip+res, hid) bf16 (last layer res rows unused)
                   w_o0_ref, b_o0_ref,            # (skip, skip) bf16, (skip, 1) f32
                   w_o1_ref, b_o1_ref,            # (out, skip) bf16, (out, 1) f32
                   out_ref,                       # (1, out, TT) f32
                   xinbuf_ref,                    # VMEM (Cin, P + TT) f32   (persistent)
                   resbuf_ref,                    # VMEM (L, res, P + TT) f32 (persistent)
                   *, dilations, lane_pad):
    P = lane_pad
    c_in, tt = x_ref.shape[1], x_ref.shape[2]
    K = w_in_ref.shape[0]
    skip, res = w_rs_ref.shape
    kg = w_g_ref.shape[1]
    hid = w_g_ref.shape[2] // 2
    L = len(dilations)
    t_idx = pl.program_id(1)
    bf16 = jnp.bfloat16

    # ---- carried causal history: zero on the first T tile, else shift by TT.
    # Gated on the T-tile index (never on the batch index) so it is correct
    # when the batch axis is megacore-"parallel" sharded.
    @pl.when(t_idx == 0)
    def _():
        xinbuf_ref[:, 0:P] = jnp.zeros((c_in, P), jnp.float32)
        for i in range(L):
            resbuf_ref[i, :, 0:P] = jnp.zeros((res, P), jnp.float32)

    @pl.when(t_idx > 0)
    def _():
        # Last P samples of [old history | previous tile] become the new history.
        xinbuf_ref[:, 0:P] = xinbuf_ref[:, tt:tt + P]
        for i in range(L):
            resbuf_ref[i, :, 0:P] = resbuf_ref[i, :, tt:tt + P]

    # ---- x_to_res : CausalConv1D(kernel=K, dilation=1, mask_self=True) ----
    xinbuf_ref[:, P:P + tt] = x_ref[0]
    full_in = xinbuf_ref[...]                     # (Cin, P + TT) f32
    x_res = b_in_ref[...]                         # (res, 1); broadcasts below
    for j in range(K):                            # tap j reads x[t - (K - j)]
        tap = full_in[:, P - (K - j):P - (K - j) + tt].astype(bf16)
        x_res = x_res + jnp.dot(w_in_ref[j], tap,
                                preferred_element_type=jnp.float32)

    # ---- res_to_skip : 1x1 conv ----
    x_skip = jnp.dot(w_rs_ref[...], x_res.astype(bf16),
                     preferred_element_type=jnp.float32) + b_rs_ref[...]

    # ---- residual / skip stack (statically unrolled; static shift offsets) ----
    # TODO(synk): ConditioningAdder only supported for cond_channels=() (identity).
    for i, d in enumerate(dilations):
        # Stage the current residual: needed both for this layer's dilated taps
        # and as the next T tile's carried history for this layer.
        resbuf_ref[i, :, P:P + tt] = x_res
        full = resbuf_ref[i]                      # (res, P + TT) f32
        cur = x_res.astype(bf16)
        g = b_g_ref[i]                            # (2*hid, 1); broadcasts
        for k in range(kg):                       # tap k reads x_res[t - d*(kg-1-k)]
            shift = d * (kg - 1 - k)
            tap = cur if shift == 0 else full[:, P - shift:P - shift + tt].astype(bf16)
            g = g + jnp.dot(w_g_ref[i, k], tap, preferred_element_type=jnp.float32)
        # Fused gate output split at hid (free sublane slice).
        x_hid = (jax.nn.sigmoid(g[:hid]) * jnp.tanh(g[hid:])).astype(bf16)
        if i < L - 1:
            # hid_to_skip and hid_to_res fused into one dot, split at `skip`.
            comb = jnp.dot(w_sr_ref[i], x_hid, preferred_element_type=jnp.float32)
            x_skip = x_skip + comb[:skip]
            x_res = x_res + comb[skip:]
        else:
            # Last layer: hid_to_res is None in the module -> skip that work.
            x_skip = x_skip + jnp.dot(w_sr_ref[i][:skip], x_hid,
                                      preferred_element_type=jnp.float32)

    # ---- skip_to_out head: relu -> 1x1 -> relu -> 1x1 ----
    h = jnp.maximum(x_skip, 0.0)
    h = jnp.dot(w_o0_ref[...], h.astype(bf16),
                preferred_element_type=jnp.float32) + b_o0_ref[...]
    h = jnp.maximum(h, 0.0)
    o = jnp.dot(w_o1_ref[...], h.astype(bf16),
                preferred_element_type=jnp.float32) + b_o1_ref[...]
    out_ref[0] = o.astype(out_ref.dtype)          # lane-dense (out, TT) store


def wavenet_forward(x_nct, params, *, dilations, tile_t=None, lane_pad=128):
    """x_nct: (N, C_in, T) exactly like the PyTorch module; returns (N, C_out, T)."""
    N, c_in, T = x_nct.shape
    (w_in, b_in, w_rs, b_rs, w_g, b_g, w_sr, w_o0, b_o0, w_o1, b_o1) = params
    out_ch = w_o1.shape[0]
    res = w_rs.shape[1]
    L = len(dilations)
    kg = w_g.shape[1]
    K = w_in.shape[0]

    if tile_t is None:
        # The T tile sits on lanes, so it must be a multiple of 128 or the full T.
        # TODO(synk): pick the tile per generation (smaller on v7x's 64 MiB VMEM).
        tile_t = T
        for cand in (512, 256, 128):
            if T % cand == 0:
                tile_t = cand
                break
    assert T % tile_t == 0, (T, tile_t)
    num_t = T // tile_t
    # Carried history must cover the deepest causal reach of any conv.
    assert max(max(dilations) * (kg - 1), K) <= lane_pad

    def full_spec(a):
        return pl.BlockSpec(a.shape, lambda n, t, _nd=a.ndim: (0,) * _nd)

    kernel = functools.partial(
        wavenet_kernel,
        dilations=tuple(int(d) for d in dilations),
        lane_pad=lane_pad)

    # VMEM budget from actual buffer sizes (no hard-coded constant):
    # x / out tile blocks and the weight slabs are double-buffered by the
    # pipeline; the two causal-history buffers are persistent scratch.
    blk_bytes = 2 * (c_in + out_ch) * tile_t * 4
    w_bytes = 2 * sum(int(a.size) * a.dtype.itemsize for a in params)
    scr_bytes = (c_in + L * res) * (lane_pad + tile_t) * 4
    try:
        phys_vmem = int(pltpu.get_tpu_info().vmem_capacity_bytes)
    except Exception:
        phys_vmem = 64 << 20          # v7x per-core VMEM; conservative default
    vmem_limit = max(32 << 20,
                     min(2 * (blk_bytes + w_bytes + scr_bytes) + (8 << 20),
                         phys_vmem * 3 // 4))

    return pl.pallas_call(
        kernel,
        out_shape=jax.ShapeDtypeStruct((N, out_ch, T), jnp.float32),
        grid=(N, num_t),
        in_specs=[pl.BlockSpec((1, c_in, tile_t), lambda n, t: (n, 0, t))]
                 + [full_spec(a) for a in params],
        out_specs=pl.BlockSpec((1, out_ch, tile_t), lambda n, t: (n, 0, t)),
        scratch_shapes=[pltpu.VMEM((c_in, lane_pad + tile_t), jnp.float32),
                        pltpu.VMEM((L, res, lane_pad + tile_t), jnp.float32)],
        compiler_params=pltpu.CompilerParams(
            dimension_semantics=("parallel", "arbitrary"),
            vmem_limit_bytes=int(vmem_limit)),
    )(x_nct, *params)


# ---------------- parameter setup (deterministic, in-script) ----------------

def init_params_pt(key, in_channels, out_channels, hid, res, skip,
                   num_layers, kernel_size, in_kernel_size):
    """PyTorch-layout weights: conv weight (Cout, Cin, K), bias (Cout,)."""
    keys = jax.random.split(key, 12)

    def u(k, shape, scale=0.1):
        return jax.random.uniform(k, shape, jnp.float32, -scale, scale)

    return dict(
        w_in=u(keys[0], (res, in_channels, in_kernel_size)),
        b_in=u(keys[1], (res,)),
        w_rs=u(keys[2], (skip, res, 1)),
        b_rs=u(keys[3], (skip,)),
        w_gate=u(keys[4], (num_layers, 2 * hid, res, kernel_size)),
        b_gate=u(keys[5], (num_layers, 2 * hid)),
        w_hs=u(keys[6], (num_layers, skip, hid)),
        w_hr=u(keys[7], (num_layers - 1, res, hid)),
        w_o0=u(keys[8], (skip, skip, 1)),
        b_o0=u(keys[9], (skip,)),
        w_o1=u(keys[10], (out_channels, skip, 1)),
        b_o1=u(keys[11], (out_channels,)),
    )


def to_kernel_params(pt, num_layers):
    """Restack PyTorch conv weights into channel-major matmul slabs (W @ X form)."""
    f32, bf16 = jnp.float32, jnp.bfloat16
    res, c_in, K = pt['w_in'].shape
    hid = pt['w_gate'].shape[1] // 2

    w_in = jnp.transpose(pt['w_in'], (2, 0, 1)).astype(bf16)          # (K, res, Cin)
    b_in = pt['b_in'][:, None].astype(f32)                            # (res, 1)
    w_rs = pt['w_rs'][:, :, 0].astype(bf16)                           # (skip, res)
    b_rs = pt['b_rs'][:, None].astype(f32)

    # Gated conv: (L, 2*hid, res, Kg) -> per-tap slabs (L, Kg, 2*hid, res);
    # sigmoid/tanh halves stay fused (split in-kernel by a free sublane slice).
    w_g = jnp.transpose(pt['w_gate'], (0, 3, 1, 2)).astype(bf16)
    b_g = pt['b_gate'][:, :, None].astype(f32)                        # (L, 2*hid, 1)

    # hid_to_skip / hid_to_res fused along output channels: (L, skip+res, hid).
    # The last layer's hid_to_res is None -> zero rows (never read in-kernel).
    w_hr_full = jnp.concatenate(
        [pt['w_hr'], jnp.zeros((1, res, hid), f32)], axis=0)          # (L, res, hid)
    w_sr = jnp.concatenate([pt['w_hs'], w_hr_full], axis=1).astype(bf16)

    w_o0 = pt['w_o0'][:, :, 0].astype(bf16)                           # (skip, skip)
    b_o0 = pt['b_o0'][:, None].astype(f32)
    w_o1 = pt['w_o1'][:, :, 0].astype(bf16)                           # (out, skip)
    b_o1 = pt['b_o1'][:, None].astype(f32)
    return (w_in, b_in, w_rs, b_rs, w_g, b_g, w_sr, w_o0, b_o0, w_o1, b_o1)


# ---------------- pure-JAX reference (mirrors the PyTorch module) -----------

def reference_forward(x, pt, num_layers, num_stages, hid):
    def conv1d(x, w, b=None, dilation=1):
        y = lax.conv_general_dilated(
            x, w, window_strides=(1,), padding=[(0, 0)],
            rhs_dilation=(dilation,), dimension_numbers=('NCH', 'OIH', 'NCH'))
        if b is not None:
            y = y + b[None, :, None]
        return y

    def causal(x, w, b, dilation, mask_self):
        pad = dilation * (w.shape[2] - 1) + int(mask_self)
        xp = jnp.pad(x, ((0, 0), (0, 0), (pad, 0)))
        y = conv1d(xp, w, b, dilation)
        if mask_self:
            y = y[:, :, :-1]
        return y

    x_res = causal(x, pt['w_in'], pt['b_in'], 1, True)
    x_skip = conv1d(x_res, pt['w_rs'], pt['b_rs'])
    for i in range(num_layers):
        d = 2 ** (i % num_stages)
        gates = causal(x_res, pt['w_gate'][i], pt['b_gate'][i], d, False)
        g1, g2 = gates[:, :hid], gates[:, hid:]
        x_hid = jax.nn.sigmoid(g1) * jnp.tanh(g2)
        x_skip = x_skip + conv1d(x_hid, pt['w_hs'][i][..., None])
        if i < num_layers - 1:
            x_res = x_res + conv1d(x_hid, pt['w_hr'][i][..., None])
    x_skip = jnp.maximum(x_skip, 0.0)
    x_skip = conv1d(x_skip, pt['w_o0'], pt['b_o0'])
    x_skip = jnp.maximum(x_skip, 0.0)
    x_skip = conv1d(x_skip, pt['w_o1'], pt['b_o1'])
    return x_skip


if __name__ == "__main__":
    # Small, module-consistent channel counts; T sized so the T-block grid axis
    # and the carried causal history are exercised (two lane-aligned 128 tiles).
    N, C_IN, T = 2, 4, 256
    OUT_CH, HID, RES, SKIP = 8, 8, 16, 16
    NUM_LAYERS, NUM_STAGES = 4, 3
    KERNEL_SIZE, IN_KERNEL_SIZE = 2, 4

    key = jax.random.PRNGKey(0)
    kx, kp = jax.random.split(key)
    x = jax.random.normal(kx, (N, C_IN, T), jnp.float32)   # N x C x T (PyTorch layout)

    pt = init_params_pt(kp, C_IN, OUT_CH, HID, RES, SKIP,
                        NUM_LAYERS, KERNEL_SIZE, IN_KERNEL_SIZE)
    params = to_kernel_params(pt, NUM_LAYERS)
    dilations = tuple(2 ** (i % NUM_STAGES) for i in range(NUM_LAYERS))

    y = wavenet_forward(x, params, dilations=dilations)
    y = jax.block_until_ready(y)

    y_ref = reference_forward(x, pt, NUM_LAYERS, NUM_STAGES, HID)
    assert y.shape == (N, OUT_CH, T), y.shape
    max_err = float(jnp.max(jnp.abs(y - y_ref)))
    # bf16 MXU operands vs. f32 reference -> loosened tolerance.
    assert jnp.allclose(y, y_ref, atol=5e-2, rtol=5e-2), max_err
    print("KERNEL_OK")
</pallas_src>

<mosaic_0001>
module attributes {stable_mosaic.version = 11 : i64} {
  func.func @wavenet_kernel(%arg0: i32, %arg1: i32, %arg2: memref<1x4x256xf32, #tpu.memory_space<vmem>>, %arg3: memref<4x16x4xbf16, #tpu.memory_space<vmem>>, %arg4: memref<16x1xf32, #tpu.memory_space<vmem>>, %arg5: memref<16x16xbf16, #tpu.memory_space<vmem>>, %arg6: memref<16x1xf32, #tpu.memory_space<vmem>>, %arg7: memref<4x2x16x16xbf16, #tpu.memory_space<vmem>>, %arg8: memref<4x16x1xf32, #tpu.memory_space<vmem>>, %arg9: memref<4x32x8xbf16, #tpu.memory_space<vmem>>, %arg10: memref<16x16xbf16, #tpu.memory_space<vmem>>, %arg11: memref<16x1xf32, #tpu.memory_space<vmem>>, %arg12: memref<8x16xbf16, #tpu.memory_space<vmem>>, %arg13: memref<8x1xf32, #tpu.memory_space<vmem>>, %arg14: memref<1x8x256xf32, #tpu.memory_space<vmem>>, %arg15: memref<4x384xf32, #tpu.memory_space<vmem>>, %arg16: memref<4x16x384xf32, #tpu.memory_space<vmem>>) attributes {dimension_semantics = [#tpu.dimension_semantics<parallel>, #tpu.dimension_semantics<arbitrary>], iteration_bounds = array<i64: 2, 1>, scalar_prefetch = 0 : i64, scratch_operands = 2 : i64, tpu.core_type = #tpu.core_type<tc>, window_params = [{transform_indices = @transform_0, window_bounds = array<i64: 1, 4, 256>}, {pipeline_mode = #tpu.pipeline_mode<synchronous>, transform_indices = @transform_1, window_bounds = array<i64: 4, 16, 4>}, {pipeline_mode = #tpu.pipeline_mode<synchronous>, transform_indices = @transform_2, window_bounds = array<i64: 16, 1>}, {pipeline_mode = #tpu.pipeline_mode<synchronous>, transform_indices = @transform_3, window_bounds = array<i64: 16, 16>}, {pipeline_mode = #tpu.pipeline_mode<synchronous>, transform_indices = @transform_4, window_bounds = array<i64: 16, 1>}, {pipeline_mode = #tpu.pipeline_mode<synchronous>, transform_indices = @transform_5, window_bounds = array<i64: 4, 2, 16, 16>}, {pipeline_mode = #tpu.pipeline_mode<synchronous>, transform_indices = @transform_6, window_bounds = array<i64: 4, 16, 1>}, {pipeline_mode = #tpu.pipeline_mode<synchronous>, transform_indices = @transform_7, window_bounds = array<i64: 4, 32, 8>}, {pipeline_mode = #tpu.pipeline_mode<synchronous>, transform_indices = @transform_8, window_bounds = array<i64: 16, 16>}, {pipeline_mode = #tpu.pipeline_mode<synchronous>, transform_indices = @transform_9, window_bounds = array<i64: 16, 1>}, {pipeline_mode = #tpu.pipeline_mode<synchronous>, transform_indices = @transform_10, window_bounds = array<i64: 8, 16>}, {pipeline_mode = #tpu.pipeline_mode<synchronous>, transform_indices = @transform_11, window_bounds = array<i64: 8, 1>}, {transform_indices = @transform_12, window_bounds = array<i64: 1, 8, 256>}]} {
    %c0_i32 = arith.constant 0 : i32
    %0 = arith.cmpi eq, %arg1, %c0_i32 : i32
    %1 = arith.extui %0 : i1 to i32
    %c0_i32_0 = arith.constant 0 : i32
    %2 = arith.cmpi ne, %1, %c0_i32_0 : i32
    scf.if %2 {
      %cst_138 = arith.constant 0.000000e+00 : f32
      %203 = vector.broadcast %cst_138 : f32 to vector<4x128xf32>
      %c0_139 = arith.constant 0 : index
      %c0_140 = arith.constant 0 : index
      %204 = vector.load %arg15[%c0_139, %c0_140] : memref<4x384xf32, #tpu.memory_space<vmem>>, vector<4x128xf32>
      tpu.vector_store %arg15[%c0_139, %c0_140], %203 {strides = array<i32>} : memref<4x384xf32, #tpu.memory_space<vmem>>, vector<4x128xf32>,
      %cst_141 = arith.constant 0.000000e+00 : f32
      %205 = vector.broadcast %cst_141 : f32 to vector<16x128xf32>
      %c0_142 = arith.constant 0 : index
      %c0_143 = arith.constant 0 : index
      %c0_144 = arith.constant 0 : index
      %206 = vector.load %arg16[%c0_142, %c0_143, %c0_144] : memref<4x16x384xf32, #tpu.memory_space<vmem>>, vector<1x16x128xf32>
      %207 = vector.shape_cast %206 : vector<1x16x128xf32> to vector<16x128xf32>
      %208 = vector.shape_cast %205 : vector<16x128xf32> to vector<1x16x128xf32>
      tpu.vector_store %arg16[%c0_142, %c0_143, %c0_144], %208 {strides = array<i32>} : memref<4x16x384xf32, #tpu.memory_space<vmem>>, vector<1x16x128xf32>,
      %cst_145 = arith.constant 0.000000e+00 : f32
      %209 = vector.broadcast %cst_145 : f32 to vector<16x128xf32>
      %c1_146 = arith.constant 1 : index
      %c0_147 = arith.constant 0 : index
      %c0_148 = arith.constant 0 : index
      %210 = vector.load %arg16[%c1_146, %c0_147, %c0_148] : memref<4x16x384xf32, #tpu.memory_space<vmem>>, vector<1x16x128xf32>
      %211 = vector.shape_cast %210 : vector<1x16x128xf32> to vector<16x128xf32>
      %212 = vector.shape_cast %209 : vector<16x128xf32> to vector<1x16x128xf32>
      tpu.vector_store %arg16[%c1_146, %c0_147, %c0_148], %212 {strides = array<i32>} : memref<4x16x384xf32, #tpu.memory_space<vmem>>, vector<1x16x128xf32>,
      %cst_149 = arith.constant 0.000000e+00 : f32
      %213 = vector.broadcast %cst_149 : f32 to vector<16x128xf32>
      %c2_150 = arith.constant 2 : index
      %c0_151 = arith.constant 0 : index
      %c0_152 = arith.constant 0 : index
      %214 = vector.load %arg16[%c2_150, %c0_151, %c0_152] : memref<4x16x384xf32, #tpu.memory_space<vmem>>, vector<1x16x128xf32>
      %215 = vector.shape_cast %214 : vector<1x16x128xf32> to vector<16x128xf32>
      %216 = vector.shape_cast %213 : vector<16x128xf32> to vector<1x16x128xf32>
      tpu.vector_store %arg16[%c2_150, %c0_151, %c0_152], %216 {strides = array<i32>} : memref<4x16x384xf32, #tpu.memory_space<vmem>>, vector<1x16x128xf32>,
      %cst_153 = arith.constant 0.000000e+00 : f32
      %217 = vector.broadcast %cst_153 : f32 to vector<16x128xf32>
      %c3_154 = arith.constant 3 : index
      %c0_155 = arith.constant 0 : index
      %c0_156 = arith.constant 0 : index
      %218 = vector.load %arg16[%c3_154, %c0_155, %c0_156] : memref<4x16x384xf32, #tpu.memory_space<vmem>>, vector<1x16x128xf32>
      %219 = vector.shape_cast %218 : vector<1x16x128xf32> to vector<16x128xf32>
      %220 = vector.shape_cast %217 : vector<16x128xf32> to vector<1x16x128xf32>
      tpu.vector_store %arg16[%c3_154, %c0_155, %c0_156], %220 {strides = array<i32>} : memref<4x16x384xf32, #tpu.memory_space<vmem>>, vector<1x16x128xf32>,
    } else {
    }
    %c0_i32_1 = arith.constant 0 : i32
    %3 = arith.cmpi sgt, %arg1, %c0_i32_1 : i32
    %4 = arith.extui %3 : i1 to i32
    %c0_i32_2 = arith.constant 0 : i32
    %5 = arith.cmpi ne, %4, %c0_i32_2 : i32
    scf.if %5 {
      %c0_138 = arith.constant 0 : index
      %c256 = arith.constant 256 : index
      %203 = vector.load %arg15[%c0_138, %c256] : memref<4x384xf32, #tpu.memory_space<vmem>>, vector<4x128xf32>
      %c0_139 = arith.constant 0 : index
      %c0_140 = arith.constant 0 : index
      %204 = vector.load %arg15[%c0_139, %c0_140] : memref<4x384xf32, #tpu.memory_space<vmem>>, vector<4x128xf32>
      tpu.vector_store %arg15[%c0_139, %c0_140], %203 {strides = array<i32>} : memref<4x384xf32, #tpu.memory_space<vmem>>, vector<4x128xf32>,
      %c0_141 = arith.constant 0 : index
      %c0_142 = arith.constant 0 : index
      %c256_143 = arith.constant 256 : index
      %205 = vector.load %arg16[%c0_141, %c0_142, %c256_143] : memref<4x16x384xf32, #tpu.memory_space<vmem>>, vector<1x16x128xf32>
      %206 = vector.shape_cast %205 : vector<1x16x128xf32> to vector<16x128xf32>
      %c0_144 = arith.constant 0 : index
      %c0_145 = arith.constant 0 : index
      %c0_146 = arith.constant 0 : index
      %207 = vector.load %arg16[%c0_144, %c0_145, %c0_146] : memref<4x16x384xf32, #tpu.memory_space<vmem>>, vector<1x16x128xf32>
      %208 = vector.shape_cast %207 : vector<1x16x128xf32> to vector<16x128xf32>
      %209 = vector.shape_cast %206 : vector<16x128xf32> to vector<1x16x128xf32>
      tpu.vector_store %arg16[%c0_144, %c0_145, %c0_146], %209 {strides = array<i32>} : memref<4x16x384xf32, #tpu.memory_space<vmem>>, vector<1x16x128xf32>,
      %c1_147 = arith.constant 1 : index
      %c0_148 = arith.constant 0 : index
      %c256_149 = arith.constant 256 : index
      %210 = vector.load %arg16[%c1_147, %c0_148, %c256_149] : memref<4x16x384xf32, #tpu.memory_space<vmem>>, vector<1x16x128xf32>
      %211 = vector.shape_cast %210 : vector<1x16x128xf32> to vector<16x128xf32>
      %c1_150 = arith.constant 1 : index
      %c0_151 = arith.constant 0 : index
      %c0_152 = arith.constant 0 : index
      %212 = vector.load %arg16[%c1_150, %c0_151, %c0_152] : memref<4x16x384xf32, #tpu.memory_space<vmem>>, vector<1x16x128xf32>
      %213 = vector.shape_cast %212 : vector<1x16x128xf32> to vector<16x128xf32>
      %214 = vector.shape_cast %211 : vector<16x128xf32> to vector<1x16x128xf32>
      tpu.vector_store %arg16[%c1_150, %c0_151, %c0_152], %214 {strides = array<i32>} : memref<4x16x384xf32, #tpu.memory_space<vmem>>, vector<1x16x128xf32>,
      %c2_153 = arith.constant 2 : index
      %c0_154 = arith.constant 0 : index
      %c256_155 = arith.constant 256 : index
      %215 = vector.load %arg16[%c2_153, %c0_154, %c256_155] : memref<4x16x384xf32, #tpu.memory_space<vmem>>, vector<1x16x128xf32>
      %216 = vector.shape_cast %215 : vector<1x16x128xf32> to vector<16x128xf32>
      %c2_156 = arith.constant 2 : index
      %c0_157 = arith.constant 0 : index
      %c0_158 = arith.constant 0 : index
      %217 = vector.load %arg16[%c2_156, %c0_157, %c0_158] : memref<4x16x384xf32, #tpu.memory_space<vmem>>, vector<1x16x128xf32>
      %218 = vector.shape_cast %217 : vector<1x16x128xf32> to vector<16x128xf32>
      %219 = vector.shape_cast %216 : vector<16x128xf32> to vector<1x16x128xf32>
      tpu.vector_store %arg16[%c2_156, %c0_157, %c0_158], %219 {strides = array<i32>} : memref<4x16x384xf32, #tpu.memory_space<vmem>>, vector<1x16x128xf32>,
      %c3_159 = arith.constant 3 : index
      %c0_160 = arith.constant 0 : index
      %c256_161 = arith.constant 256 : index
      %220 = vector.load %arg16[%c3_159, %c0_160, %c256_161] : memref<4x16x384xf32, #tpu.memory_space<vmem>>, vector<1x16x128xf32>
      %221 = vector.shape_cast %220 : vector<1x16x128xf32> to vector<16x128xf32>
      %c3_162 = arith.constant 3 : index
      %c0_163 = arith.constant 0 : index
      %c0_164 = arith.constant 0 : index
      %222 = vector.load %arg16[%c3_162, %c0_163, %c0_164] : memref<4x16x384xf32, #tpu.memory_space<vmem>>, vector<1x16x128xf32>
      %223 = vector.shape_cast %222 : vector<1x16x128xf32> to vector<16x128xf32>
      %224 = vector.shape_cast %221 : vector<16x128xf32> to vector<1x16x128xf32>
      tpu.vector_store %arg16[%c3_162, %c0_163, %c0_164], %224 {strides = array<i32>} : memref<4x16x384xf32, #tpu.memory_space<vmem>>, vector<1x16x128xf32>,
    } else {
    }
    %c0 = arith.constant 0 : index
    %c0_3 = arith.constant 0 : index
    %c0_4 = arith.constant 0 : index
    %6 = vector.load %arg2[%c0, %c0_3, %c0_4] : memref<1x4x256xf32, #tpu.memory_space<vmem>>, vector<1x4x256xf32>
    %7 = vector.shape_cast %6 : vector<1x4x256xf32> to vector<4x256xf32>
    %c0_5 = arith.constant 0 : index
    %c128 = arith.constant 128 : index
    %8 = vector.load %arg15[%c0_5, %c128] : memref<4x384xf32, #tpu.memory_space<vmem>>, vector<4x256xf32>
    tpu.vector_store %arg15[%c0_5, %c128], %7 {strides = array<i32>} : memref<4x384xf32, #tpu.memory_space<vmem>>, vector<4x256xf32>,
    %c0_6 = arith.constant 0 : index
    %c0_7 = arith.constant 0 : index
    %9 = vector.load %arg15[%c0_6, %c0_7] : memref<4x384xf32, #tpu.memory_space<vmem>>, vector<4x384xf32>
    %c0_8 = arith.constant 0 : index
    %c0_9 = arith.constant 0 : index
    %10 = vector.load %arg4[%c0_8, %c0_9] : memref<16x1xf32, #tpu.memory_space<vmem>>, vector<16x1xf32>
    %11 = vector.extract_strided_slice %9 {offsets = [0, 124], sizes = [4, 256], strides = [1, 1]} : vector<4x384xf32> to vector<4x256xf32>
    %12 = arith.truncf %11 : vector<4x256xf32> to vector<4x256xbf16>
    %c0_10 = arith.constant 0 : index
    %c0_11 = arith.constant 0 : index
    %c0_12 = arith.constant 0 : index
    %13 = vector.load %arg3[%c0_10, %c0_11, %c0_12] : memref<4x16x4xbf16, #tpu.memory_space<vmem>>, vector<1x16x4xbf16>
    %14 = vector.shape_cast %13 : vector<1x16x4xbf16> to vector<16x4xbf16>
    %cst = arith.constant dense<0.000000e+00> : vector<16x256xf32>
    %15 = tpu.matmul %14, %12, %cst {dimension_numbers = #tpu.dot_dimension_numbers<[1], [0], [0], [1], [0, 0, 1, 1], [], []>} : vector<16x4xbf16>, vector<4x256xbf16>, vector<16x256xf32> -> vector<16x256xf32>
    %16 = vector.broadcast %10 : vector<16x1xf32> to vector<16x256xf32>
    %17 = arith.addf %16, %15 : vector<16x256xf32>
    %18 = vector.extract_strided_slice %9 {offsets = [0, 125], sizes = [4, 256], strides = [1, 1]} : vector<4x384xf32> to vector<4x256xf32>
    %19 = arith.truncf %18 : vector<4x256xf32> to vector<4x256xbf16>
    %c1 = arith.constant 1 : index
    %c0_13 = arith.constant 0 : index
    %c0_14 = arith.constant 0 : index
    %20 = vector.load %arg3[%c1, %c0_13, %c0_14] : memref<4x16x4xbf16, #tpu.memory_space<vmem>>, vector<1x16x4xbf16>
    %21 = vector.shape_cast %20 : vector<1x16x4xbf16> to vector<16x4xbf16>
    %cst_15 = arith.constant dense<0.000000e+00> : vector<16x256xf32>
    %22 = tpu.matmul %21, %19, %cst_15 {dimension_numbers = #tpu.dot_dimension_numbers<[1], [0], [0], [1], [0, 0, 1, 1], [], []>} : vector<16x4xbf16>, vector<4x256xbf16>, vector<16x256xf32> -> vector<16x256xf32>
    %23 = arith.addf %17, %22 : vector<16x256xf32>
    %24 = vector.extract_strided_slice %9 {offsets = [0, 126], sizes = [4, 256], strides = [1, 1]} : vector<4x384xf32> to vector<4x256xf32>
    %25 = arith.truncf %24 : vector<4x256xf32> to vector<4x256xbf16>
    %c2 = arith.constant 2 : index
    %c0_16 = arith.constant 0 : index
    %c0_17 = arith.constant 0 : index
    %26 = vector.load %arg3[%c2, %c0_16, %c0_17] : memref<4x16x4xbf16, #tpu.memory_space<vmem>>, vector<1x16x4xbf16>
    %27 = vector.shape_cast %26 : vector<1x16x4xbf16> to vector<16x4xbf16>
    %cst_18 = arith.constant dense<0.000000e+00> : vector<16x256xf32>
    %28 = tpu.matmul %27, %25, %cst_18 {dimension_numbers = #tpu.dot_dimension_numbers<[1], [0], [0], [1], [0, 0, 1, 1], [], []>} : vector<16x4xbf16>, vector<4x256xbf16>, vector<16x256xf32> -> vector<16x256xf32>
    %29 = arith.addf %23, %28 : vector<16x256xf32>
    %30 = vector.extract_strided_slice %9 {offsets = [0, 127], sizes = [4, 256], strides = [1, 1]} : vector<4x384xf32> to vector<4x256xf32>
    %31 = arith.truncf %30 : vector<4x256xf32> to vector<4x256xbf16>
    %c3 = arith.constant 3 : index
    %c0_19 = arith.constant 0 : index
    %c0_20 = arith.constant 0 : index
    %32 = vector.load %arg3[%c3, %c0_19, %c0_20] : memref<4x16x4xbf16, #tpu.memory_space<vmem>>, vector<1x16x4xbf16>
    %33 = vector.shape_cast %32 : vector<1x16x4xbf16> to vector<16x4xbf16>
    %cst_21 = arith.constant dense<0.000000e+00> : vector<16x256xf32>
    %34 = tpu.matmul %33, %31, %cst_21 {dimension_numbers = #tpu.dot_dimension_numbers<[1], [0], [0], [1], [0, 0, 1, 1], [], []>} : vector<16x4xbf16>, vector<4x256xbf16>, vector<16x256xf32> -> vector<16x256xf32>
    %35 = arith.addf %29, %34 : vector<16x256xf32>
    %c0_22 = arith.constant 0 : index
    %c0_23 = arith.constant 0 : index
    %36 = vector.load %arg5[%c0_22, %c0_23] : memref<16x16xbf16, #tpu.memory_space<vmem>>, vector<16x16xbf16>
    %37 = arith.truncf %35 : vector<16x256xf32> to vector<16x256xbf16>
    %cst_24 = arith.constant dense<0.000000e+00> : vector<16x256xf32>
    %38 = tpu.matmul %36, %37, %cst_24 {dimension_numbers = #tpu.dot_dimension_numbers<[1], [0], [0], [1], [0, 0, 1, 1], [], []>} : vector<16x16xbf16>, vector<16x256xbf16>, vector<16x256xf32> -> vector<16x256xf32>
    %c0_25 = arith.constant 0 : index
    %c0_26 = arith.constant 0 : index
    %39 = vector.load %arg6[%c0_25, %c0_26] : memref<16x1xf32, #tpu.memory_space<vmem>>, vector<16x1xf32>
    %40 = vector.broadcast %39 : vector<16x1xf32> to vector<16x256xf32>
    %41 = arith.addf %38, %40 : vector<16x256xf32>
    %c0_27 = arith.constant 0 : index
    %c0_28 = arith.constant 0 : index
    %c128_29 = arith.constant 128 : index
    %42 = vector.load %arg16[%c0_27, %c0_28, %c128_29] : memref<4x16x384xf32, #tpu.memory_space<vmem>>, vector<1x16x256xf32>
    %43 = vector.shape_cast %42 : vector<1x16x256xf32> to vector<16x256xf32>
    %44 = vector.shape_cast %35 : vector<16x256xf32> to vector<1x16x256xf32>
    tpu.vector_store %arg16[%c0_27, %c0_28, %c128_29], %44 {strides = array<i32>} : memref<4x16x384xf32, #tpu.memory_space<vmem>>, vector<1x16x256xf32>,
    %c0_30 = arith.constant 0 : index
    %c0_31 = arith.constant 0 : index
    %c0_32 = arith.constant 0 : index
    %45 = vector.load %arg16[%c0_30, %c0_31, %c0_32] : memref<4x16x384xf32, #tpu.memory_space<vmem>>, vector<1x16x384xf32>
    %46 = vector.shape_cast %45 : vector<1x16x384xf32> to vector<16x384xf32>
    %47 = arith.truncf %35 : vector<16x256xf32> to vector<16x256xbf16>
    %c0_33 = arith.constant 0 : index
    %c0_34 = arith.constant 0 : index
    %c0_35 = arith.constant 0 : index
    %48 = vector.load %arg8[%c0_33, %c0_34, %c0_35] : memref<4x16x1xf32, #tpu.memory_space<vmem>>, vector<1x16x1xf32>
    %49 = vector.shape_cast %48 : vector<1x16x1xf32> to vector<16x1xf32>
    %50 = vector.extract_strided_slice %46 {offsets = [0, 127], sizes = [16, 256], strides = [1, 1]} : vector<16x384xf32> to vector<16x256xf32>
    %51 = arith.truncf %50 : vector<16x256xf32> to vector<16x256xbf16>
    %c0_36 = arith.constant 0 : index
    %c0_37 = arith.constant 0 : index
    %c0_38 = arith.constant 0 : index
    %c0_39 = arith.constant 0 : index
    %52 = vector.load %arg7[%c0_36, %c0_37, %c0_38, %c0_39] : memref<4x2x16x16xbf16, #tpu.memory_space<vmem>>, vector<1x1x16x16xbf16>
    %53 = vector.shape_cast %52 : vector<1x1x16x16xbf16> to vector<16x16xbf16>
    %cst_40 = arith.constant dense<0.000000e+00> : vector<16x256xf32>
    %54 = tpu.matmul %53, %51, %cst_40 {dimension_numbers = #tpu.dot_dimension_numbers<[1], [0], [0], [1], [0, 0, 1, 1], [], []>} : vector<16x16xbf16>, vector<16x256xbf16>, vector<16x256xf32> -> vector<16x256xf32>
    %55 = vector.broadcast %49 : vector<16x1xf32> to vector<16x256xf32>
    %56 = arith.addf %55, %54 : vector<16x256xf32>
    %c0_41 = arith.constant 0 : index
    %c1_42 = arith.constant 1 : index
    %c0_43 = arith.constant 0 : index
    %c0_44 = arith.constant 0 : index
    %57 = vector.load %arg7[%c0_41, %c1_42, %c0_43, %c0_44] : memref<4x2x16x16xbf16, #tpu.memory_space<vmem>>, vector<1x1x16x16xbf16>
    %58 = vector.shape_cast %57 : vector<1x1x16x16xbf16> to vector<16x16xbf16>
    %cst_45 = arith.constant dense<0.000000e+00> : vector<16x256xf32>
    %59 = tpu.matmul %58, %47, %cst_45 {dimension_numbers = #tpu.dot_dimension_numbers<[1], [0], [0], [1], [0, 0, 1, 1], [], []>} : vector<16x16xbf16>, vector<16x256xbf16>, vector<16x256xf32> -> vector<16x256xf32>
    %60 = arith.addf %56, %59 : vector<16x256xf32>
    %61 = vector.extract_strided_slice %60 {offsets = [0, 0], sizes = [8, 256], strides = [1, 1]} : vector<16x256xf32> to vector<8x256xf32>
    %62 = arith.negf %61 : vector<8x256xf32>
    %63 = math.exp %62 : vector<8x256xf32>
    %cst_46 = arith.constant 1.000000e+00 : f32
    %64 = vector.broadcast %cst_46 : f32 to vector<8x256xf32>
    %65 = arith.addf %64, %63 : vector<8x256xf32>
    %66 = arith.divf %64, %65 : vector<8x256xf32>
    %67 = vector.extract_strided_slice %60 {offsets = [8, 0], sizes = [8, 256], strides = [1, 1]} : vector<16x256xf32> to vector<8x256xf32>
    %68 = math.tanh %67 : vector<8x256xf32>
    %69 = arith.mulf %66, %68 : vector<8x256xf32>
    %70 = arith.truncf %69 : vector<8x256xf32> to vector<8x256xbf16>
    %c0_47 = arith.constant 0 : index
    %c0_48 = arith.constant 0 : index
    %c0_49 = arith.constant 0 : index
    %71 = vector.load %arg9[%c0_47, %c0_48, %c0_49] : memref<4x32x8xbf16, #tpu.memory_space<vmem>>, vector<1x32x8xbf16>
    %72 = vector.shape_cast %71 : vector<1x32x8xbf16> to vector<32x8xbf16>
    %cst_50 = arith.constant dense<0.000000e+00> : vector<32x256xf32>
    %73 = tpu.matmul %72, %70, %cst_50 {dimension_numbers = #tpu.dot_dimension_numbers<[1], [0], [0], [1], [0, 0, 1, 1], [], []>} : vector<32x8xbf16>, vector<8x256xbf16>, vector<32x256xf32> -> vector<32x256xf32>
    %74 = vector.extract_strided_slice %73 {offsets = [0, 0], sizes = [16, 256], strides = [1, 1]} : vector<32x256xf32> to vector<16x256xf32>
    %75 = arith.addf %41, %74 : vector<16x256xf32>
    %76 = vector.extract_strided_slice %73 {offsets = [16, 0], sizes = [16, 256], strides = [1, 1]} : vector<32x256xf32> to vector<16x256xf32>
    %77 = arith.addf %35, %76 : vector<16x256xf32>
    %c1_51 = arith.constant 1 : index
    %c0_52 = arith.constant 0 : index
    %c128_53 = arith.constant 128 : index
    %78 = vector.load %arg16[%c1_51, %c0_52, %c128_53] : memref<4x16x384xf32, #tpu.memory_space<vmem>>, vector<1x16x256xf32>
    %79 = vector.shape_cast %78 : vector<1x16x256xf32> to vector<16x256xf32>
    %80 = vector.shape_cast %77 : vector<16x256xf32> to vector<1x16x256xf32>
    tpu.vector_store %arg16[%c1_51, %c0_52, %c128_53], %80 {strides = array<i32>} : memref<4x16x384xf32, #tpu.memory_space<vmem>>, vector<1x16x256xf32>,
    %c1_54 = arith.constant 1 : index
    %c0_55 = arith.constant 0 : index
    %c0_56 = arith.constant 0 : index
    %81 = vector.load %arg16[%c1_54, %c0_55, %c0_56] : memref<4x16x384xf32, #tpu.memory_space<vmem>>, vector<1x16x384xf32>
    %82 = vector.shape_cast %81 : vector<1x16x384xf32> to vector<16x384xf32>
    %83 = arith.truncf %77 : vector<16x256xf32> to vector<16x256xbf16>
    %c1_57 = arith.constant 1 : index
    %c0_58 = arith.constant 0 : index
    %c0_59 = arith.constant 0 : index
    %84 = vector.load %arg8[%c1_57, %c0_58, %c0_59] : memref<4x16x1xf32, #tpu.memory_space<vmem>>, vector<1x16x1xf32>
    %85 = vector.shape_cast %84 : vector<1x16x1xf32> to vector<16x1xf32>
    %86 = vector.extract_strided_slice %82 {offsets = [0, 126], sizes = [16, 256], strides = [1, 1]} : vector<16x384xf32> to vector<16x256xf32>
    %87 = arith.truncf %86 : vector<16x256xf32> to vector<16x256xbf16>
    %c1_60 = arith.constant 1 : index
    %c0_61 = arith.constant 0 : index
    %c0_62 = arith.constant 0 : index
    %c0_63 = arith.constant 0 : index
    %88 = vector.load %arg7[%c1_60, %c0_61, %c0_62, %c0_63] : memref<4x2x16x16xbf16, #tpu.memory_space<vmem>>, vector<1x1x16x16xbf16>
    %89 = vector.shape_cast %88 : vector<1x1x16x16xbf16> to vector<16x16xbf16>
    %cst_64 = arith.constant dense<0.000000e+00> : vector<16x256xf32>
    %90 = tpu.matmul %89, %87, %cst_64 {dimension_numbers = #tpu.dot_dimension_numbers<[1], [0], [0], [1], [0, 0, 1, 1], [], []>} : vector<16x16xbf16>, vector<16x256xbf16>, vector<16x256xf32> -> vector<16x256xf32>
    %91 = vector.broadcast %85 : vector<16x1xf32> to vector<16x256xf32>
    %92 = arith.addf %91, %90 : vector<16x256xf32>
    %c1_65 = arith.constant 1 : index
    %c1_66 = arith.constant 1 : index
    %c0_67 = arith.constant 0 : index
    %c0_68 = arith.constant 0 : index
    %93 = vector.load %arg7[%c1_65, %c1_66, %c0_67, %c0_68] : memref<4x2x16x16xbf16, #tpu.memory_space<vmem>>, vector<1x1x16x16xbf16>
    %94 = vector.shape_cast %93 : vector<1x1x16x16xbf16> to vector<16x16xbf16>
    %cst_69 = arith.constant dense<0.000000e+00> : vector<16x256xf32>
    %95 = tpu.matmul %94, %83, %cst_69 {dimension_numbers = #tpu.dot_dimension_numbers<[1], [0], [0], [1], [0, 0, 1, 1], [], []>} : vector<16x16xbf16>, vector<16x256xbf16>, vector<16x256xf32> -> vector<16x256xf32>
    %96 = arith.addf %92, %95 : vector<16x256xf32>
    %97 = vector.extract_strided_slice %96 {offsets = [0, 0], sizes = [8, 256], strides = [1, 1]} : vector<16x256xf32> to vector<8x256xf32>
    %98 = arith.negf %97 : vector<8x256xf32>
    %99 = math.exp %98 : vector<8x256xf32>
    %cst_70 = arith.constant 1.000000e+00 : f32
    %100 = vector.broadcast %cst_70 : f32 to vector<8x256xf32>
    %101 = arith.addf %100, %99 : vector<8x256xf32>
    %102 = arith.divf %100, %101 : vector<8x256xf32>
    %103 = vector.extract_strided_slice %96 {offsets = [8, 0], sizes = [8, 256], strides = [1, 1]} : vector<16x256xf32> to vector<8x256xf32>
    %104 = math.tanh %103 : vector<8x256xf32>
    %105 = arith.mulf %102, %104 : vector<8x256xf32>
    %106 = arith.truncf %105 : vector<8x256xf32> to vector<8x256xbf16>
    %c1_71 = arith.constant 1 : index
    %c0_72 = arith.constant 0 : index
    %c0_73 = arith.constant 0 : index
    %107 = vector.load %arg9[%c1_71, %c0_72, %c0_73] : memref<4x32x8xbf16, #tpu.memory_space<vmem>>, vector<1x32x8xbf16>
    %108 = vector.shape_cast %107 : vector<1x32x8xbf16> to vector<32x8xbf16>
    %cst_74 = arith.constant dense<0.000000e+00> : vector<32x256xf32>
    %109 = tpu.matmul %108, %106, %cst_74 {dimension_numbers = #tpu.dot_dimension_numbers<[1], [0], [0], [1], [0, 0, 1, 1], [], []>} : vector<32x8xbf16>, vector<8x256xbf16>, vector<32x256xf32> -> vector<32x256xf32>
    %110 = vector.extract_strided_slice %109 {offsets = [0, 0], sizes = [16, 256], strides = [1, 1]} : vector<32x256xf32> to vector<16x256xf32>
    %111 = arith.addf %75, %110 : vector<16x256xf32>
    %112 = vector.extract_strided_slice %109 {offsets = [16, 0], sizes = [16, 256], strides = [1, 1]} : vector<32x256xf32> to vector<16x256xf32>
    %113 = arith.addf %77, %112 : vector<16x256xf32>
    %c2_75 = arith.constant 2 : index
    %c0_76 = arith.constant 0 : index
    %c128_77 = arith.constant 128 : index
    %114 = vector.load %arg16[%c2_75, %c0_76, %c128_77] : memref<4x16x384xf32, #tpu.memory_space<vmem>>, vector<1x16x256xf32>
    %115 = vector.shape_cast %114 : vector<1x16x256xf32> to vector<16x256xf32>
    %116 = vector.shape_cast %113 : vector<16x256xf32> to vector<1x16x256xf32>
    tpu.vector_store %arg16[%c2_75, %c0_76, %c128_77], %116 {strides = array<i32>} : memref<4x16x384xf32, #tpu.memory_space<vmem>>, vector<1x16x256xf32>,
    %c2_78 = arith.constant 2 : index
    %c0_79 = arith.constant 0 : index
    %c0_80 = arith.constant 0 : index
    %117 = vector.load %arg16[%c2_78, %c0_79, %c0_80] : memref<4x16x384xf32, #tpu.memory_space<vmem>>, vector<1x16x384xf32>
    %118 = vector.shape_cast %117 : vector<1x16x384xf32> to vector<16x384xf32>
    %119 = arith.truncf %113 : vector<16x256xf32> to vector<16x256xbf16>
    %c2_81 = arith.constant 2 : index
    %c0_82 = arith.constant 0 : index
    %c0_83 = arith.constant 0 : index
    %120 = vector.load %arg8[%c2_81, %c0_82, %c0_83] : memref<4x16x1xf32, #tpu.memory_space<vmem>>, vector<1x16x1xf32>
    %121 = vector.shape_cast %120 : vector<1x16x1xf32> to vector<16x1xf32>
    %122 = vector.extract_strided_slice %118 {offsets = [0, 124], sizes = [16, 256], strides = [1, 1]} : vector<16x384xf32> to vector<16x256xf32>
    %123 = arith.truncf %122 : vector<16x256xf32> to vector<16x256xbf16>
    %c2_84 = arith.constant 2 : index
    %c0_85 = arith.constant 0 : index
    %c0_86 = arith.constant 0 : index
    %c0_87 = arith.constant 0 : index
    %124 = vector.load %arg7[%c2_84, %c0_85, %c0_86, %c0_87] : memref<4x2x16x16xbf16, #tpu.memory_space<vmem>>, vector<1x1x16x16xbf16>
    %125 = vector.shape_cast %124 : vector<1x1x16x16xbf16> to vector<16x16xbf16>
    %cst_88 = arith.constant dense<0.000000e+00> : vector<16x256xf32>
    %126 = tpu.matmul %125, %123, %cst_88 {dimension_numbers = #tpu.dot_dimension_numbers<[1], [0], [0], [1], [0, 0, 1, 1], [], []>} : vector<16x16xbf16>, vector<16x256xbf16>, vector<16x256xf32> -> vector<16x256xf32>
    %127 = vector.broadcast %121 : vector<16x1xf32> to vector<16x256xf32>
    %128 = arith.addf %127, %126 : vector<16x256xf32>
    %c2_89 = arith.constant 2 : index
    %c1_90 = arith.constant 1 : index
    %c0_91 = arith.constant 0 : index
    %c0_92 = arith.constant 0 : index
    %129 = vector.load %arg7[%c2_89, %c1_90, %c0_91, %c0_92] : memref<4x2x16x16xbf16, #tpu.memory_space<vmem>>, vector<1x1x16x16xbf16>
    %130 = vector.shape_cast %129 : vector<1x1x16x16xbf16> to vector<16x16xbf16>
    %cst_93 = arith.constant dense<0.000000e+00> : vector<16x256xf32>
    %131 = tpu.matmul %130, %119, %cst_93 {dimension_numbers = #tpu.dot_dimension_numbers<[1], [0], [0], [1], [0, 0, 1, 1], [], []>} : vector<16x16xbf16>, vector<16x256xbf16>, vector<16x256xf32> -> vector<16x256xf32>
    %132 = arith.addf %128, %131 : vector<16x256xf32>
    %133 = vector.extract_strided_slice %132 {offsets = [0, 0], sizes = [8, 256], strides = [1, 1]} : vector<16x256xf32> to vector<8x256xf32>
    %134 = arith.negf %133 : vector<8x256xf32>
    %135 = math.exp %134 : vector<8x256xf32>
    %cst_94 = arith.constant 1.000000e+00 : f32
    %136 = vector.broadcast %cst_94 : f32 to vector<8x256xf32>
    %137 = arith.addf %136, %135 : vector<8x256xf32>
    %138 = arith.divf %136, %137 : vector<8x256xf32>
    %139 = vector.extract_strided_slice %132 {offsets = [8, 0], sizes = [8, 256], strides = [1, 1]} : vector<16x256xf32> to vector<8x256xf32>
    %140 = math.tanh %139 : vector<8x256xf32>
    %141 = arith.mulf %138, %140 : vector<8x256xf32>
    %142 = arith.truncf %141 : vector<8x256xf32> to vector<8x256xbf16>
    %c2_95 = arith.constant 2 : index
    %c0_96 = arith.constant 0 : index
    %c0_97 = arith.constant 0 : index
    %143 = vector.load %arg9[%c2_95, %c0_96, %c0_97] : memref<4x32x8xbf16, #tpu.memory_space<vmem>>, vector<1x32x8xbf16>
    %144 = vector.shape_cast %143 : vector<1x32x8xbf16> to vector<32x8xbf16>
    %cst_98 = arith.constant dense<0.000000e+00> : vector<32x256xf32>
    %145 = tpu.matmul %144, %142, %cst_98 {dimension_numbers = #tpu.dot_dimension_numbers<[1], [0], [0], [1], [0, 0, 1, 1], [], []>} : vector<32x8xbf16>, vector<8x256xbf16>, vector<32x256xf32> -> vector<32x256xf32>
    %146 = vector.extract_strided_slice %145 {offsets = [0, 0], sizes = [16, 256], strides = [1, 1]} : vector<32x256xf32> to vector<16x256xf32>
    %147 = arith.addf %111, %146 : vector<16x256xf32>
    %148 = vector.extract_strided_slice %145 {offsets = [16, 0], sizes = [16, 256], strides = [1, 1]} : vector<32x256xf32> to vector<16x256xf32>
    %149 = arith.addf %113, %148 : vector<16x256xf32>
    %c3_99 = arith.constant 3 : index
    %c0_100 = arith.constant 0 : index
    %c128_101 = arith.constant 128 : index
    %150 = vector.load %arg16[%c3_99, %c0_100, %c128_101] : memref<4x16x384xf32, #tpu.memory_space<vmem>>, vector<1x16x256xf32>
    %151 = vector.shape_cast %150 : vector<1x16x256xf32> to vector<16x256xf32>
    %152 = vector.shape_cast %149 : vector<16x256xf32> to vector<1x16x256xf32>
    tpu.vector_store %arg16[%c3_99, %c0_100, %c128_101], %152 {strides = array<i32>} : memref<4x16x384xf32, #tpu.memory_space<vmem>>, vector<1x16x256xf32>,
    %c3_102 = arith.constant 3 : index
    %c0_103 = arith.constant 0 : index
    %c0_104 = arith.constant 0 : index
    %153 = vector.load %arg16[%c3_102, %c0_103, %c0_104] : memref<4x16x384xf32, #tpu.memory_space<vmem>>, vector<1x16x384xf32>
    %154 = vector.shape_cast %153 : vector<1x16x384xf32> to vector<16x384xf32>
    %155 = arith.truncf %149 : vector<16x256xf32> to vector<16x256xbf16>
    %c3_105 = arith.constant 3 : index
    %c0_106 = arith.constant 0 : index
    %c0_107 = arith.constant 0 : index
    %156 = vector.load %arg8[%c3_105, %c0_106, %c0_107] : memref<4x16x1xf32, #tpu.memory_space<vmem>>, vector<1x16x1xf32>
    %157 = vector.shape_cast %156 : vector<1x16x1xf32> to vector<16x1xf32>
    %158 = vector.extract_strided_slice %154 {offsets = [0, 127], sizes = [16, 256], strides = [1, 1]} : vector<16x384xf32> to vector<16x256xf32>
    %159 = arith.truncf %158 : vector<16x256xf32> to vector<16x256xbf16>
    %c3_108 = arith.constant 3 : index
    %c0_109 = arith.constant 0 : index
    %c0_110 = arith.constant 0 : index
    %c0_111 = arith.constant 0 : index
    %160 = vector.load %arg7[%c3_108, %c0_109, %c0_110, %c0_111] : memref<4x2x16x16xbf16, #tpu.memory_space<vmem>>, vector<1x1x16x16xbf16>
    %161 = vector.shape_cast %160 : vector<1x1x16x16xbf16> to vector<16x16xbf16>
    %cst_112 = arith.constant dense<0.000000e+00> : vector<16x256xf32>
    %162 = tpu.matmul %161, %159, %cst_112 {dimension_numbers = #tpu.dot_dimension_numbers<[1], [0], [0], [1], [0, 0, 1, 1], [], []>} : vector<16x16xbf16>, vector<16x256xbf16>, vector<16x256xf32> -> vector<16x256xf32>
    %163 = vector.broadcast %157 : vector<16x1xf32> to vector<16x256xf32>
    %164 = arith.addf %163, %162 : vector<16x256xf32>
    %c3_113 = arith.constant 3 : index
    %c1_114 = arith.constant 1 : index
    %c0_115 = arith.constant 0 : index
    %c0_116 = arith.constant 0 : index
    %165 = vector.load %arg7[%c3_113, %c1_114, %c0_115, %c0_116] : memref<4x2x16x16xbf16, #tpu.memory_space<vmem>>, vector<1x1x16x16xbf16>
    %166 = vector.shape_cast %165 : vector<1x1x16x16xbf16> to vector<16x16xbf16>
    %cst_117 = arith.constant dense<0.000000e+00> : vector<16x256xf32>
    %167 = tpu.matmul %166, %155, %cst_117 {dimension_numbers = #tpu.dot_dimension_numbers<[1], [0], [0], [1], [0, 0, 1, 1], [], []>} : vector<16x16xbf16>, vector<16x256xbf16>, vector<16x256xf32> -> vector<16x256xf32>
    %168 = arith.addf %164, %167 : vector<16x256xf32>
    %169 = vector.extract_strided_slice %168 {offsets = [0, 0], sizes = [8, 256], strides = [1, 1]} : vector<16x256xf32> to vector<8x256xf32>
    %170 = arith.negf %169 : vector<8x256xf32>
    %171 = math.exp %170 : vector<8x256xf32>
    %cst_118 = arith.constant 1.000000e+00 : f32
    %172 = vector.broadcast %cst_118 : f32 to vector<8x256xf32>
    %173 = arith.addf %172, %171 : vector<8x256xf32>
    %174 = arith.divf %172, %173 : vector<8x256xf32>
    %175 = vector.extract_strided_slice %168 {offsets = [8, 0], sizes = [8, 256], strides = [1, 1]} : vector<16x256xf32> to vector<8x256xf32>
    %176 = math.tanh %175 : vector<8x256xf32>
    %177 = arith.mulf %174, %176 : vector<8x256xf32>
    %178 = arith.truncf %177 : vector<8x256xf32> to vector<8x256xbf16>
    %c3_119 = arith.constant 3 : index
    %c0_120 = arith.constant 0 : index
    %c0_121 = arith.constant 0 : index
    %179 = vector.load %arg9[%c3_119, %c0_120, %c0_121] : memref<4x32x8xbf16, #tpu.memory_space<vmem>>, vector<1x32x8xbf16>
    %180 = vector.shape_cast %179 : vector<1x32x8xbf16> to vector<32x8xbf16>
    %181 = vector.extract_strided_slice %180 {offsets = [0, 0], sizes = [16, 8], strides = [1, 1]} : vector<32x8xbf16> to vector<16x8xbf16>
    %cst_122 = arith.constant dense<0.000000e+00> : vector<16x256xf32>
    %182 = tpu.matmul %181, %178, %cst_122 {dimension_numbers = #tpu.dot_dimension_numbers<[1], [0], [0], [1], [0, 0, 1, 1], [], []>} : vector<16x8xbf16>, vector<8x256xbf16>, vector<16x256xf32> -> vector<16x256xf32>
    %183 = arith.addf %147, %182 : vector<16x256xf32>
    %cst_123 = arith.constant 0.000000e+00 : f32
    %184 = vector.broadcast %cst_123 : f32 to vector<16x256xf32>
    %185 = arith.maximumf %183, %184 : vector<16x256xf32>
    %c0_124 = arith.constant 0 : index
    %c0_125 = arith.constant 0 : index
    %186 = vector.load %arg10[%c0_124, %c0_125] : memref<16x16xbf16, #tpu.memory_space<vmem>>, vector<16x16xbf16>
    %187 = arith.truncf %185 : vector<16x256xf32> to vector<16x256xbf16>
    %cst_126 = arith.constant dense<0.000000e+00> : vector<16x256xf32>
    %188 = tpu.matmul %186, %187, %cst_126 {dimension_numbers = #tpu.dot_dimension_numbers<[1], [0], [0], [1], [0, 0, 1, 1], [], []>} : vector<16x16xbf16>, vector<16x256xbf16>, vector<16x256xf32> -> vector<16x256xf32>
    %c0_127 = arith.constant 0 : index
    %c0_128 = arith.constant 0 : index
    %189 = vector.load %arg11[%c0_127, %c0_128] : memref<16x1xf32, #tpu.memory_space<vmem>>, vector<16x1xf32>
    %190 = vector.broadcast %189 : vector<16x1xf32> to vector<16x256xf32>
    %191 = arith.addf %188, %190 : vector<16x256xf32>
    %cst_129 = arith.constant 0.000000e+00 : f32
    %192 = vector.broadcast %cst_129 : f32 to vector<16x256xf32>
    %193 = arith.maximumf %191, %192 : vector<16x256xf32>
    %c0_130 = arith.constant 0 : index
    %c0_131 = arith.constant 0 : index
    %194 = vector.load %arg12[%c0_130, %c0_131] : memref<8x16xbf16, #tpu.memory_space<vmem>>, vector<8x16xbf16>
    %195 = arith.truncf %193 : vector<16x256xf32> to vector<16x256xbf16>
    %cst_132 = arith.constant dense<0.000000e+00> : vector<8x256xf32>
    %196 = tpu.matmul %194, %195, %cst_132 {dimension_numbers = #tpu.dot_dimension_numbers<[1], [0], [0], [1], [0, 0, 1, 1], [], []>} : vector<8x16xbf16>, vector<16x256xbf16>, vector<8x256xf32> -> vector<8x256xf32>
    %c0_133 = arith.constant 0 : index
    %c0_134 = arith.constant 0 : index
    %197 = vector.load %arg13[%c0_133, %c0_134] : memref<8x1xf32, #tpu.memory_space<vmem>>, vector<8x1xf32>
    %198 = vector.broadcast %197 : vector<8x1xf32> to vector<8x256xf32>
    %199 = arith.addf %196, %198 : vector<8x256xf32>
    %c0_135 = arith.constant 0 : index
    %c0_136 = arith.constant 0 : index
    %c0_137 = arith.constant 0 : index
    %200 = vector.load %arg14[%c0_135, %c0_136, %c0_137] : memref<1x8x256xf32, #tpu.memory_space<vmem>>, vector<1x8x256xf32>
    %201 = vector.shape_cast %200 : vector<1x8x256xf32> to vector<8x256xf32>
    %202 = vector.shape_cast %199 : vector<8x256xf32> to vector<1x8x256xf32>
    tpu.vector_store %arg14[%c0_135, %c0_136, %c0_137], %202 {strides = array<i32>} : memref<1x8x256xf32, #tpu.memory_space<vmem>>, vector<1x8x256xf32>,
    return
  }
  func.func @transform_0(%arg0: i32, %arg1: i32) -> (i32, i32, i32) {
    %c0_i32 = arith.constant 0 : i32
    %c0_i32_0 = arith.constant 0 : i32
    return %arg0, %c0_i32, %arg1 : i32, i32, i32
  }
  func.func @transform_1(%arg0: i32, %arg1: i32) -> (i32, i32, i32) {
    %c0_i32 = arith.constant 0 : i32
    %c0_i32_0 = arith.constant 0 : i32
    %c0_i32_1 = arith.constant 0 : i32
    %c0_i32_2 = arith.constant 0 : i32
    return %c0_i32, %c0_i32_0, %c0_i32_1 : i32, i32, i32
  }
  func.func @transform_2(%arg0: i32, %arg1: i32) -> (i32, i32) {
    %c0_i32 = arith.constant 0 : i32
    %c0_i32_0 = arith.constant 0 : i32
    %c0_i32_1 = arith.constant 0 : i32
    return %c0_i32, %c0_i32_0 : i32, i32
  }
  func.func @transform_3(%arg0: i32, %arg1: i32) -> (i32, i32) {
    %c0_i32 = arith.constant 0 : i32
    %c0_i32_0 = arith.constant 0 : i32
    %c0_i32_1 = arith.constant 0 : i32
    return %c0_i32, %c0_i32_0 : i32, i32
  }
  func.func @transform_4(%arg0: i32, %arg1: i32) -> (i32, i32) {
    %c0_i32 = arith.constant 0 : i32
    %c0_i32_0 = arith.constant 0 : i32
    %c0_i32_1 = arith.constant 0 : i32
    return %c0_i32, %c0_i32_0 : i32, i32
  }
  func.func @transform_5(%arg0: i32, %arg1: i32) -> (i32, i32, i32, i32) {
    %c0_i32 = arith.constant 0 : i32
    %c0_i32_0 = arith.constant 0 : i32
    %c0_i32_1 = arith.constant 0 : i32
    %c0_i32_2 = arith.constant 0 : i32
    %c0_i32_3 = arith.constant 0 : i32
    return %c0_i32, %c0_i32_0, %c0_i32_1, %c0_i32_2 : i32, i32, i32, i32
  }
  func.func @transform_6(%arg0: i32, %arg1: i32) -> (i32, i32, i32) {
    %c0_i32 = arith.constant 0 : i32
    %c0_i32_0 = arith.constant 0 : i32
    %c0_i32_1 = arith.constant 0 : i32
    %c0_i32_2 = arith.constant 0 : i32
    return %c0_i32, %c0_i32_0, %c0_i32_1 : i32, i32, i32
  }
  func.func @transform_7(%arg0: i32, %arg1: i32) -> (i32, i32, i32) {
    %c0_i32 = arith.constant 0 : i32
    %c0_i32_0 = arith.constant 0 : i32
    %c0_i32_1 = arith.constant 0 : i32
    %c0_i32_2 = arith.constant 0 : i32
    return %c0_i32, %c0_i32_0, %c0_i32_1 : i32, i32, i32
  }
  func.func @transform_8(%arg0: i32, %arg1: i32) -> (i32, i32) {
    %c0_i32 = arith.constant 0 : i32
    %c0_i32_0 = arith.constant 0 : i32
    %c0_i32_1 = arith.constant 0 : i32
    return %c0_i32, %c0_i32_0 : i32, i32
  }
  func.func @transform_9(%arg0: i32, %arg1: i32) -> (i32, i32) {
    %c0_i32 = arith.constant 0 : i32
    %c0_i32_0 = arith.constant 0 : i32
    %c0_i32_1 = arith.constant 0 : i32
    return %c0_i32, %c0_i32_0 : i32, i32
  }
  func.func @transform_10(%arg0: i32, %arg1: i32) -> (i32, i32) {
    %c0_i32 = arith.constant 0 : i32
    %c0_i32_0 = arith.constant 0 : i32
    %c0_i32_1 = arith.constant 0 : i32
    return %c0_i32, %c0_i32_0 : i32, i32
  }
  func.func @transform_11(%arg0: i32, %arg1: i32) -> (i32, i32) {
    %c0_i32 = arith.constant 0 : i32
    %c0_i32_0 = arith.constant 0 : i32
    %c0_i32_1 = arith.constant 0 : i32
    return %c0_i32, %c0_i32_0 : i32, i32
  }
  func.func @transform_12(%arg0: i32, %arg1: i32) -> (i32, i32, i32) {
    %c0_i32 = arith.constant 0 : i32
    %c0_i32_0 = arith.constant 0 : i32
    return %arg0, %c0_i32, %arg1 : i32, i32, i32
  }
}

</mosaic_0001>

<llo_original>
// kernel: tpu_custom_call.1
$region0: #{tpu_custom_call.1}
  #allocation0 [shape = 'u32[]', space=smem, size = 0x4, offset = 0x4, fixed_abs, tag = 'smem constant byte address 0x4 - core index']
  #allocation1 [shape = 'u32[144,128]{1,0:T(1,128)}', space=vmem, size = 0x12000, scoped, tag = 'internal scratch']
  #allocation2 [shape = 'f32[4,384]{1,0:T(4,128)}', space=vmem, size = 0x1800, scoped, tag = 'scratch operand']
  #allocation3 [shape = 'f32[4,16,384]{2,1,0:T(8,128)}', space=vmem, size = 0x18000, scoped, tag = 'scratch operand']
  %s0 = inlined_call_operand.vmem [shape: f32[2,4,256], index: 0, kind: input, shape index: {}]
  %s1 = inlined_call_operand.vmem [shape: bf16[4,16,4], index: 1, kind: input, shape index: {}]
  %s2 = inlined_call_operand.vmem [shape: f32[16,1], index: 2, kind: input, shape index: {}]
  %s3 = inlined_call_operand.vmem [shape: bf16[16,16], index: 3, kind: input, shape index: {}]
  %s4 = inlined_call_operand.vmem [shape: f32[16,1], index: 4, kind: input, shape index: {}]
  %s5 = inlined_call_operand.vmem [shape: bf16[4,2,16,16], index: 5, kind: input, shape index: {}]
  %s6 = inlined_call_operand.vmem [shape: f32[4,16,1], index: 6, kind: input, shape index: {}]
  %s7 = inlined_call_operand.vmem [shape: bf16[4,32,8], index: 7, kind: input, shape index: {}]
  %s8 = inlined_call_operand.vmem [shape: bf16[16,16], index: 8, kind: input, shape index: {}]
  %s9 = inlined_call_operand.vmem [shape: f32[16,1], index: 9, kind: input, shape index: {}]
  %s10 = inlined_call_operand.vmem [shape: bf16[8,16], index: 10, kind: input, shape index: {}]
  %s11 = inlined_call_operand.vmem [shape: f32[8,1], index: 11, kind: input, shape index: {}]
  %s12 = inlined_call_operand.hbm [shape: f32[2,8,256], index: 12, kind: output, shape index: {}]
  %s13 = sld [smem:[#allocation0]]
  $region89: #{tpu_custom_call.1} parent=0
    _
  %s15 = ssub.s32 1, %s13
  %s16 = scalar_select 0, %s15, %s13
  $region1: #{tpu_custom_call.1} parent=0
    #allocation4 [shape = 'u8[16384]{0}', space=vmem, size = 0x4000, scoped, tag = 'output window, operand 0']
    #allocation5 [shape = 's32[2]{0}', space=sflag, size = 0x8, scoped, tag = 'scoped memory for tpu_custom_call.1']
    %17 = vsyncpa [#allocation5], 0
    %s18 = scalar_lea.sflag [#allocation5], 1
    %19 = vsyncpa %s18, 0
    loop: start=0, step=1, limit=4
    $region2: #{tpu_custom_call.1} parent=1 // loop_pre_header
      _
    $region3: #{tpu_custom_call.1} parent=1 // loop_header
      %s21 = sphi 0, %s25
      %p22 = scmp.ge.s32.totalorder %s21, 4
      %s28 = sphi 0, %s40
      %s29 = sphi 0, %s36
      %s30 = sphi 0, %s28
      %s31 = sphi 0, %s29
      %s32 = sphi 0, %s30
      %s33 = sphi 0, %s31
      %s45 = sphi 0, %s47
      %s48 = sphi 0, %s45
      %s49 = sphi 0, %s48
      %s65 = sphi 0, %s49
      %s69 = sphi 0, %s69
      %s71 = sphi 0, %s69
      %s72 = sphi 0, %s71
      %s86 = sphi 0, %s72
      %s90 = sphi 0, %s90
      %s92 = sphi 0, %s90
      %s93 = sphi 0, %s92
      %s107 = sphi 0, %s93
      %s111 = sphi 0, %s111
      %s113 = sphi 0, %s111
      %s114 = sphi 0, %s113
      %s128 = sphi 0, %s114
      %s132 = sphi 0, %s132
      %s134 = sphi 0, %s132
      %s135 = sphi 0, %s134
      %s149 = sphi 0, %s135
      %s153 = sphi 0, %s153
      %s155 = sphi 0, %s153
      %s156 = sphi 0, %s155
      %s170 = sphi 0, %s156
      %s174 = sphi 0, %s174
      %s176 = sphi 0, %s174
      %s177 = sphi 0, %s176
      %s191 = sphi 0, %s177
      %s195 = sphi 0, %s195
      %s197 = sphi 0, %s195
      %s198 = sphi 0, %s197
      %s212 = sphi 0, %s198
      %s216 = sphi 0, %s216
      %s218 = sphi 0, %s216
      %s219 = sphi 0, %s218
      %s233 = sphi 0, %s219
      %s237 = sphi 0, %s237
      %s239 = sphi 0, %s237
      %s240 = sphi 0, %s239
      %s254 = sphi 0, %s240
      %s258 = sphi 0, %s258
      %s260 = sphi 0, %s258
      %s261 = sphi 0, %s260
      %s275 = sphi 0, %s261
      %s279 = sphi 0, %s279
      %s281 = sphi 0, %s279
      %s282 = sphi 0, %s281
      %s296 = sphi 0, %s282
      %s304 = sphi 0, %s306
      %s307 = sphi 0, %s304
      %s308 = sphi 0, %s307
      %s324 = sphi 0, %s308
    $region4: #{tpu_custom_call.1} parent=1 // loop_header_branch
      %24 = sbr.rel (%p22) target = $region8
    $region5: #{tpu_custom_call.1} parent=1 // loop_body
      %s26 = ssub.s32 %s21, 1
      %s27 = ssub.s32 %s21, 2
      %s34 = sadd.s32 1, %s29
      %p35 = scmp.ge.s32.totalorder %s34, 1
      %s36 = scalar_select %p35, 0, %s34
      %s37 = sadd.s32 1, %s28
      %s38 = scalar_select %p35, %s37, %s28
      %p39 = scmp.ge.s32.totalorder %s38, 2
      %s40 = scalar_select %p39, 0, %s38
      %s41 = ssub.s32 %s28, %s40
      %s42 = ssub.s32 %s29, %s36
      %s43 = sor.u32 %s41, %s42
      %p44 = scmp.eq.s32.totalorder %s43, 0
      %s46 = sadd.s32 %s45, 1
      %s47 = scalar_select %p44, %s45, %s46
      %p50 = pneg %p44
      %p51 = scmp.eq.s32.totalorder %s21, 1
      %p52 = por %p50, %p51
      %p53 = scmp.ne.s32.totalorder %s45, %s48
      %p54 = scmp.eq.s32.totalorder %s21, 0
      %p55 = por %p53, %p54
      %p56 = scmp.ne.s32.totalorder %s45, %s48
      %p57 = scmp.eq.s32.totalorder %s26, 1
      %p58 = por %p56, %p57
      %p59 = scmp.ne.s32.totalorder %s48, %s49
      %p60 = scmp.eq.s32.totalorder %s26, 0
      %p61 = por %p59, %p60
      %p62 = scmp.ne.s32.totalorder %s48, %s49
      %p63 = scmp.eq.s32.totalorder %s27, 1
      %p64 = por %p62, %p63
      %p66 = scmp.ne.s32.totalorder %s49, %s65
      %p67 = scmp.eq.s32.totalorder %s27, 0
      %p68 = por %p66, %p67
      %s70 = sadd.s32 %s69, 1
      %p73 = scmp.eq.s32.totalorder %s21, 1
      %p74 = scmp.ne.s32.totalorder %s69, %s71
      %p75 = scmp.eq.s32.totalorder %s21, 0
      %p76 = por %p74, %p75
      %p77 = scmp.ne.s32.totalorder %s69, %s71
      %p78 = scmp.eq.s32.totalorder %s26, 1
      %p79 = por %p77, %p78
      %p80 = scmp.ne.s32.totalorder %s71, %s72
      %p81 = scmp.eq.s32.totalorder %s26, 0
      %p82 = por %p80, %p81
      %p83 = scmp.ne.s32.totalorder %s71, %s72
      %p84 = scmp.eq.s32.totalorder %s27, 1
      %p85 = por %p83, %p84
      %p87 = scmp.ne.s32.totalorder %s72, %s86
      %p88 = scmp.eq.s32.totalorder %s27, 0
      %p89 = por %p87, %p88
      %s91 = sadd.s32 %s90, 1
      %p94 = scmp.eq.s32.totalorder %s21, 1
      %p95 = scmp.ne.s32.totalorder %s90, %s92
      %p96 = scmp.eq.s32.totalorder %s21, 0
      %p97 = por %p95, %p96
      %p98 = scmp.ne.s32.totalorder %s90, %s92
      %p99 = scmp.eq.s32.totalorder %s26, 1
      %p100 = por %p98, %p99
      %p101 = scmp.ne.s32.totalorder %s92, %s93
      %p102 = scmp.eq.s32.totalorder %s26, 0
      %p103 = por %p101, %p102
      %p104 = scmp.ne.s32.totalorder %s92, %s93
      %p105 = scmp.eq.s32.totalorder %s27, 1
      %p106 = por %p104, %p105
      %p108 = scmp.ne.s32.totalorder %s93, %s107
      %p109 = scmp.eq.s32.totalorder %s27, 0
      %p110 = por %p108, %p109
      %s112 = sadd.s32 %s111, 1
      %p115 = scmp.eq.s32.totalorder %s21, 1
      %p116 = scmp.ne.s32.totalorder %s111, %s113
      %p117 = scmp.eq.s32.totalorder %s21, 0
      %p118 = por %p116, %p117
      %p119 = scmp.ne.s32.totalorder %s111, %s113
      %p120 = scmp.eq.s32.totalorder %s26, 1
      %p121 = por %p119, %p120
      %p122 = scmp.ne.s32.totalorder %s113, %s114
      %p123 = scmp.eq.s32.totalorder %s26, 0
      %p124 = por %p122, %p123
      %p125 = scmp.ne.s32.totalorder %s113, %s114
      %p126 = scmp.eq.s32.totalorder %s27, 1
      %p127 = por %p125, %p126
      %p129 = scmp.ne.s32.totalorder %s114, %s128
      %p130 = scmp.eq.s32.totalorder %s27, 0
      %p131 = por %p129, %p130
      %s133 = sadd.s32 %s132, 1
      %p136 = scmp.eq.s32.totalorder %s21, 1
      %p137 = scmp.ne.s32.totalorder %s132, %s134
      %p138 = scmp.eq.s32.totalorder %s21, 0
      %p139 = por %p137, %p138
      %p140 = scmp.ne.s32.totalorder %s132, %s134
      %p141 = scmp.eq.s32.totalorder %s26, 1
      %p142 = por %p140, %p141
      %p143 = scmp.ne.s32.totalorder %s134, %s135
      %p144 = scmp.eq.s32.totalorder %s26, 0
      %p145 = por %p143, %p144
      %p146 = scmp.ne.s32.totalorder %s134, %s135
      %p147 = scmp.eq.s32.totalorder %s27, 1
      %p148 = por %p146, %p147
      %p150 = scmp.ne.s32.totalorder %s135, %s149
      %p151 = scmp.eq.s32.totalorder %s27, 0
      %p152 = por %p150, %p151
      %s154 = sadd.s32 %s153, 1
      %p157 = scmp.eq.s32.totalorder %s21, 1
      %p158 = scmp.ne.s32.totalorder %s153, %s155
      %p159 = scmp.eq.s32.totalorder %s21, 0
      %p160 = por %p158, %p159
      %p161 = scmp.ne.s32.totalorder %s153, %s155
      %p162 = scmp.eq.s32.totalorder %s26, 1
      %p163 = por %p161, %p162
      %p164 = scmp.ne.s32.totalorder %s155, %s156
      %p165 = scmp.eq.s32.totalorder %s26, 0
      %p166 = por %p164, %p165
      %p167 = scmp.ne.s32.totalorder %s155, %s156
      %p168 = scmp.eq.s32.totalorder %s27, 1
      %p169 = por %p167, %p168
      %p171 = scmp.ne.s32.totalorder %s156, %s170
      %p172 = scmp.eq.s32.totalorder %s27, 0
      %p173 = por %p171, %p172
      %s175 = sadd.s32 %s174, 1
      %p178 = scmp.eq.s32.totalorder %s21, 1
      %p179 = scmp.ne.s32.totalorder %s174, %s176
      %p180 = scmp.eq.s32.totalorder %s21, 0
      %p181 = por %p179, %p180
      %p182 = scmp.ne.s32.totalorder %s174, %s176
      %p183 = scmp.eq.s32.totalorder %s26, 1
      %p184 = por %p182, %p183
      %p185 = scmp.ne.s32.totalorder %s176, %s177
      %p186 = scmp.eq.s32.totalorder %s26, 0
      %p187 = por %p185, %p186
      %p188 = scmp.ne.s32.totalorder %s176, %s177
      %p189 = scmp.eq.s32.totalorder %s27, 1
      %p190 = por %p188, %p189
      %p192 = scmp.ne.s32.totalorder %s177, %s191
      %p193 = scmp.eq.s32.totalorder %s27, 0
      %p194 = por %p192, %p193
      %s196 = sadd.s32 %s195, 1
      %p199 = scmp.eq.s32.totalorder %s21, 1
      %p200 = scmp.ne.s32.totalorder %s195, %s197
      %p201 = scmp.eq.s32.totalorder %s21, 0
      %p202 = por %p200, %p201
      %p203 = scmp.ne.s32.totalorder %s195, %s197
      %p204 = scmp.eq.s32.totalorder %s26, 1
      %p205 = por %p203, %p204
      %p206 = scmp.ne.s32.totalorder %s197, %s198
      %p207 = scmp.eq.s32.totalorder %s26, 0
      %p208 = por %p206, %p207
      %p209 = scmp.ne.s32.totalorder %s197, %s198
      %p210 = scmp.eq.s32.totalorder %s27, 1
      %p211 = por %p209, %p210
      %p213 = scmp.ne.s32.totalorder %s198, %s212
      %p214 = scmp.eq.s32.totalorder %s27, 0
      %p215 = por %p213, %p214
      %s217 = sadd.s32 %s216, 1
      %p220 = scmp.eq.s32.totalorder %s21, 1
      %p221 = scmp.ne.s32.totalorder %s216, %s218
      %p222 = scmp.eq.s32.totalorder %s21, 0
      %p223 = por %p221, %p222
      %p224 = scmp.ne.s32.totalorder %s216, %s218
      %p225 = scmp.eq.s32.totalorder %s26, 1
      %p226 = por %p224, %p225
      %p227 = scmp.ne.s32.totalorder %s218, %s219
      %p228 = scmp.eq.s32.totalorder %s26, 0
      %p229 = por %p227, %p228
      %p230 = scmp.ne.s32.totalorder %s218, %s219
      %p231 = scmp.eq.s32.totalorder %s27, 1
      %p232 = por %p230, %p231
      %p234 = scmp.ne.s32.totalorder %s219, %s233
      %p235 = scmp.eq.s32.totalorder %s27, 0
      %p236 = por %p234, %p235
      %s238 = sadd.s32 %s237, 1
      %p241 = scmp.eq.s32.totalorder %s21, 1
      %p242 = scmp.ne.s32.totalorder %s237, %s239
      %p243 = scmp.eq.s32.totalorder %s21, 0
      %p244 = por %p242, %p243
      %p245 = scmp.ne.s32.totalorder %s237, %s239
      %p246 = scmp.eq.s32.totalorder %s26, 1
      %p247 = por %p245, %p246
      %p248 = scmp.ne.s32.totalorder %s239, %s240
      %p249 = scmp.eq.s32.totalorder %s26, 0
      %p250 = por %p248, %p249
      %p251 = scmp.ne.s32.totalorder %s239, %s240
      %p252 = scmp.eq.s32.totalorder %s27, 1
      %p253 = por %p251, %p252
      %p255 = scmp.ne.s32.totalorder %s240, %s254
      %p256 = scmp.eq.s32.totalorder %s27, 0
      %p257 = por %p255, %p256
      %s259 = sadd.s32 %s258, 1
      %p262 = scmp.eq.s32.totalorder %s21, 1
      %p263 = scmp.ne.s32.totalorder %s258, %s260
      %p264 = scmp.eq.s32.totalorder %s21, 0
      %p265 = por %p263, %p264
      %p266 = scmp.ne.s32.totalorder %s258, %s260
      %p267 = scmp.eq.s32.totalorder %s26, 1
      %p268 = por %p266, %p267
      %p269 = scmp.ne.s32.totalorder %s260, %s261
      %p270 = scmp.eq.s32.totalorder %s26, 0
      %p271 = por %p269, %p270
      %p272 = scmp.ne.s32.totalorder %s260, %s261
      %p273 = scmp.eq.s32.totalorder %s27, 1
      %p274 = por %p272, %p273
      %p276 = scmp.ne.s32.totalorder %s261, %s275
      %p277 = scmp.eq.s32.totalorder %s27, 0
      %p278 = por %p276, %p277
      %s280 = sadd.s32 %s279, 1
      %p283 = scmp.eq.s32.totalorder %s21, 1
      %p284 = scmp.ne.s32.totalorder %s279, %s281
      %p285 = scmp.eq.s32.totalorder %s21, 0
      %p286 = por %p284, %p285
      %p287 = scmp.ne.s32.totalorder %s279, %s281
      %p288 = scmp.eq.s32.totalorder %s26, 1
      %p289 = por %p287, %p288
      %p290 = scmp.ne.s32.totalorder %s281, %s282
      %p291 = scmp.eq.s32.totalorder %s26, 0
      %p292 = por %p290, %p291
      %p293 = scmp.ne.s32.totalorder %s281, %s282
      %p294 = scmp.eq.s32.totalorder %s27, 1
      %p295 = por %p293, %p294
      %p297 = scmp.ne.s32.totalorder %s282, %s296
      %p298 = scmp.eq.s32.totalorder %s27, 0
      %p299 = por %p297, %p298
      %s300 = ssub.s32 %s28, %s40
      %s301 = ssub.s32 %s29, %s36
      %s302 = sor.u32 %s300, %s301
      %p303 = scmp.eq.s32.totalorder %s302, 0
      %s305 = sadd.s32 %s304, 1
      %s306 = scalar_select %p303, %s304, %s305
      %p309 = pneg %p303
      %p310 = scmp.eq.s32.totalorder %s21, 1
      %p311 = por %p309, %p310
      %p312 = scmp.ne.s32.totalorder %s304, %s307
      %p313 = scmp.eq.s32.totalorder %s21, 0
      %p314 = por %p312, %p313
      %p315 = scmp.ne.s32.totalorder %s304, %s307
      %p316 = scmp.eq.s32.totalorder %s26, 1
      %p317 = por %p315, %p316
      %p318 = scmp.ne.s32.totalorder %s307, %s308
      %p319 = scmp.eq.s32.totalorder %s26, 0
      %p320 = por %p318, %p319
      %p321 = scmp.ne.s32.totalorder %s307, %s308
      %p322 = scmp.eq.s32.totalorder %s27, 1
      %p323 = por %p321, %p322
      %p325 = scmp.ne.s32.totalorder %s308, %s324
      %p326 = scmp.eq.s32.totalorder %s27, 0
      %p327 = por %p325, %p326
      %p328 = scmp.le.s32.totalorder 1, %s21
      %p329 = scmp.lt.s32.totalorder %s21, 3
      %p330 = pnand %p328, %p329
      %p331 = pneg %p330
      // Predicated region
      $region9: #{tpu_custom_call.1} parent=5 // pred_check
        _
      $region10: #{tpu_custom_call.1} parent=5 // pred_check_branch
        %333 = sbr.rel (%p330) target = $region12
      $region11: #{tpu_custom_call.1} parent=5 // pred_region
        %s334 = ssub.s32 %s21, 1
        // Predicated region
        $region13: #{tpu_custom_call.1} parent=11 // pred_check
          %p335 = pneg %p82
        $region14: #{tpu_custom_call.1} parent=11 // pred_check_branch
          %337 = sbr.rel (%p335) target = $region16
        $region15: #{tpu_custom_call.1} parent=11 // pred_region
          _
        $region16: #{tpu_custom_call.1} parent=11 // pred_fallthru
          _
        // Predicated region
        $region17: #{tpu_custom_call.1} parent=11 // pred_check
          %p338 = pneg %p103
        $region18: #{tpu_custom_call.1} parent=11 // pred_check_branch
          %340 = sbr.rel (%p338) target = $region20
        $region19: #{tpu_custom_call.1} parent=11 // pred_region
          _
        $region20: #{tpu_custom_call.1} parent=11 // pred_fallthru
          _
        // Predicated region
        $region21: #{tpu_custom_call.1} parent=11 // pred_check
          %p341 = pneg %p124
        $region22: #{tpu_custom_call.1} parent=11 // pred_check_branch
          %343 = sbr.rel (%p341) target = $region24
        $region23: #{tpu_custom_call.1} parent=11 // pred_region
          _
        $region24: #{tpu_custom_call.1} parent=11 // pred_fallthru
          _
        // Predicated region
        $region25: #{tpu_custom_call.1} parent=11 // pred_check
          %p344 = pneg %p145
        $region26: #{tpu_custom_call.1} parent=11 // pred_check_branch
          %346 = sbr.rel (%p344) target = $region28
        $region27: #{tpu_custom_call.1} parent=11 // pred_region
          _
        $region28: #{tpu_custom_call.1} parent=11 // pred_fallthru
          _
        // Predicated region
        $region29: #{tpu_custom_call.1} parent=11 // pred_check
          %p347 = pneg %p166
        $region30: #{tpu_custom_call.1} parent=11 // pred_check_branch
          %349 = sbr.rel (%p347) target = $region32
        $region31: #{tpu_custom_call.1} parent=11 // pred_region
          _
        $region32: #{tpu_custom_call.1} parent=11 // pred_fallthru
          _
        // Predicated region
        $region33: #{tpu_custom_call.1} parent=11 // pred_check
          %p350 = pneg %p187
        $region34: #{tpu_custom_call.1} parent=11 // pred_check_branch
          %352 = sbr.rel (%p350) target = $region36
        $region35: #{tpu_custom_call.1} parent=11 // pred_region
          _
        $region36: #{tpu_custom_call.1} parent=11 // pred_fallthru
          _
        // Predicated region
        $region37: #{tpu_custom_call.1} parent=11 // pred_check
          %p353 = pneg %p208
        $region38: #{tpu_custom_call.1} parent=11 // pred_check_branch
          %355 = sbr.rel (%p353) target = $region40
        $region39: #{tpu_custom_call.1} parent=11 // pred_region
          _
        $region40: #{tpu_custom_call.1} parent=11 // pred_fallthru
          _
        // Predicated region
        $region41: #{tpu_custom_call.1} parent=11 // pred_check
          %p356 = pneg %p229
        $region42: #{tpu_custom_call.1} parent=11 // pred_check_branch
          %358 = sbr.rel (%p356) target = $region44
        $region43: #{tpu_custom_call.1} parent=11 // pred_region
          _
        $region44: #{tpu_custom_call.1} parent=11 // pred_fallthru
          _
        // Predicated region
        $region45: #{tpu_custom_call.1} parent=11 // pred_check
          %p359 = pneg %p250
        $region46: #{tpu_custom_call.1} parent=11 // pred_check_branch
          %361 = sbr.rel (%p359) target = $region48
        $region47: #{tpu_custom_call.1} parent=11 // pred_region
          _
        $region48: #{tpu_custom_call.1} parent=11 // pred_fallthru
          _
        // Predicated region
        $region49: #{tpu_custom_call.1} parent=11 // pred_check
          %p362 = pneg %p271
        $region50: #{tpu_custom_call.1} parent=11 // pred_check_branch
          %364 = sbr.rel (%p362) target = $region52
        $region51: #{tpu_custom_call.1} parent=11 // pred_region
          _
        $region52: #{tpu_custom_call.1} parent=11 // pred_fallthru
          _
        // Predicated region
        $region53: #{tpu_custom_call.1} parent=11 // pred_check
          %p365 = pneg %p292
        $region54: #{tpu_custom_call.1} parent=11 // pred_check_branch
          %367 = sbr.rel (%p365) target = $region56
        $region55: #{tpu_custom_call.1} parent=11 // pred_region
          _
        $region56: #{tpu_custom_call.1} parent=11 // pred_fallthru
          _
      $region12: #{tpu_custom_call.1} parent=5 // pred_fallthru
        _
      %p368 = scmp.lt.s32.totalorder %s21, 2
      // Predicated region
      $region57: #{tpu_custom_call.1} parent=5 // pred_check
        %p369 = pneg %p368
      $region58: #{tpu_custom_call.1} parent=5 // pred_check_branch
        %371 = sbr.rel (%p369) target = $region60
      $region59: #{tpu_custom_call.1} parent=5 // pred_region
        // Predicated region
        $region61: #{tpu_custom_call.1} parent=59 // pred_check
          %p372 = pneg %p55
        $region62: #{tpu_custom_call.1} parent=59 // pred_check_branch
          %374 = sbr.rel (%p372) target = $region64
        $region63: #{tpu_custom_call.1} parent=59 // pred_region
          %s375 = smul.u32 2, %s29
          %p376 = scmp.lt.s32.totalorder %s28, 1
          %s377 = scalar_select %p376, %s28, 1
          %p378 = scmp.lt.s32.totalorder %s375, 1
          %s379 = scalar_select %p378, %s375, 1
          %s380 = smul.addr %s377, 2
          %s381 = sadd.s32 %s379, %s380
          %s382 = smul.addr %s381, 4
          %s383 = scalar_lea.vmem %s0, %s382
          %s384 = smul.u32 2, %s29
        $region64: #{tpu_custom_call.1} parent=59 // pred_fallthru
          _
      $region60: #{tpu_custom_call.1} parent=5 // pred_fallthru
        _
      %p385 = scmp.le.s32.totalorder 1, %s21
      %p386 = scmp.lt.s32.totalorder %s21, 3
      %p387 = pnand %p385, %p386
      %p388 = pneg %p387
      // Predicated region
      $region65: #{tpu_custom_call.1} parent=5 // pred_check
        _
      $region66: #{tpu_custom_call.1} parent=5 // pred_check_branch
        %390 = sbr.rel (%p387) target = $region68
      $region67: #{tpu_custom_call.1} parent=5 // pred_region
        %s391 = ssub.s32 %s21, 1
        %s392 = smul.u32 2, %s31
        %p393 = scmp.lt.s32.totalorder %s30, 1
        %s394 = scalar_select %p393, %s30, 1
        %p395 = scmp.lt.s32.totalorder %s392, 1
        %s396 = scalar_select %p395, %s392, 1
        %s397 = smul.addr %s394, 2
        %s398 = sadd.s32 %s396, %s397
        %s399 = smul.addr %s398, 4
        %s400 = scalar_lea.vmem %s0, %s399
        %p401 = pneg %p61
        %p402 = pneg %p58
        %p403 = pneg %p82
        %p404 = pneg %p79
        %p405 = pneg %p103
        %p406 = pneg %p100
        %p407 = pneg %p124
        %p408 = pneg %p121
        %p409 = pneg %p145
        %p410 = pneg %p142
        %p411 = pneg %p166
        %p412 = pneg %p163
        %p413 = pneg %p187
        %p414 = pneg %p184
        %p415 = pneg %p208
        %p416 = pneg %p205
        %p417 = pneg %p229
        %p418 = pneg %p226
        %p419 = pneg %p250
        %p420 = pneg %p247
        %p421 = pneg %p271
        %p422 = pneg %p268
        %p423 = pneg %p292
        %p424 = pneg %p289
        %p425 = pneg %p320
        %p426 = pneg %p317
        %s427 = sand.u32 %s307, 1
        %s428 = scalar_lea.sflag [#allocation5], %s427
        %s429 = sand.u32 %s307, 1
        %s430 = smul.addr %s429, 16
        %s431 = scalar_lea.vmem [#allocation4], %s430
        %s432 = smul.u32 2, %s31
        %p433 = scmp.lt.s32.totalorder %s30, 1
        %s434 = scalar_select %p433, %s30, 1
        %p435 = scmp.lt.s32.totalorder %s432, 1
        %s436 = scalar_select %p435, %s432, 1
        %s437 = smul.addr %s434, 2
        %s438 = sadd.s32 %s436, %s437
        %s439 = smul.addr %s438, 4
        %s440 = scalar_lea.vmem %s0, %s439
        %s441 = smul.u32 2, %s31
        %s442 = smul.u32 2, %s31
        %p444 = scmp.eq.s32.totalorder %s31, 0
        // Predicated region
        $region69: #{tpu_custom_call.1} parent=67 // pred_check
          %p445 = pneg %p444
        $region70: #{tpu_custom_call.1} parent=67 // pred_check_branch
          %447 = sbr.rel (%p445) target = $region72
        $region71: #{tpu_custom_call.1} parent=67 // pred_region
          %448 = vst [vmem:[#allocation2] sm:$0xf] 0.0
          %449 = vst [vmem:[#allocation3] sm:$0xff] 0.0
          %450 = vst [vmem:[#allocation3 + $0x18] sm:$0xff] 0.0
          %s451 = scalar_lea.vmem [#allocation3], 48
          %452 = vst [vmem:[%s451] sm:$0xff] 0.0
          %453 = vst [vmem:[%s451 + $0x18] sm:$0xff] 0.0
          %s454 = scalar_lea.vmem [#allocation3], 96
          %455 = vst [vmem:[%s454] sm:$0xff] 0.0
          %456 = vst [vmem:[%s454 + $0x18] sm:$0xff] 0.0
          %s457 = scalar_lea.vmem [#allocation3], 144
          %458 = vst [vmem:[%s457] sm:$0xff] 0.0
          %459 = vst [vmem:[%s457 + $0x18] sm:$0xff] 0.0
        $region72: #{tpu_custom_call.1} parent=67 // pred_fallthru
          _
        %p460 = scmp.gt.s32.totalorder %s31, 0
        // Predicated region
        $region73: #{tpu_custom_call.1} parent=67 // pred_check
          %p461 = pneg %p460
        $region74: #{tpu_custom_call.1} parent=67 // pred_check_branch
          %463 = sbr.rel (%p461) target = $region76
        $region75: #{tpu_custom_call.1} parent=67 // pred_region
          %v464 = vld [vmem:[#allocation2 + $0x8] sm:$0xf]
          %465 = vst [vmem:[#allocation2] sm:$0xf] %v464
          %v466 = vld [vmem:[#allocation3 + $0x10] sm:$0xff]
          %v467 = vld [vmem:[#allocation3 + $0x28] sm:$0xff]
          %468 = vst [vmem:[#allocation3] sm:$0xff] %v466
          %469 = vst [vmem:[#allocation3 + $0x18] sm:$0xff] %v467
          %s470 = scalar_lea.vmem [#allocation3], 48
          %v471 = vld [vmem:[%s470 + $0x10] sm:$0xff]
          %v472 = vld [vmem:[%s470 + $0x28] sm:$0xff]
          %473 = vst [vmem:[%s470] sm:$0xff] %v471
          %474 = vst [vmem:[%s470 + $0x18] sm:$0xff] %v472
          %s475 = scalar_lea.vmem [#allocation3], 96
          %v476 = vld [vmem:[%s475 + $0x10] sm:$0xff]
          %v477 = vld [vmem:[%s475 + $0x28] sm:$0xff]
          %478 = vst [vmem:[%s475] sm:$0xff] %v476
          %479 = vst [vmem:[%s475 + $0x18] sm:$0xff] %v477
          %s480 = scalar_lea.vmem [#allocation3], 144
          %v481 = vld [vmem:[%s480 + $0x10] sm:$0xff]
          %v482 = vld [vmem:[%s480 + $0x28] sm:$0xff]
          %483 = vst [vmem:[%s480] sm:$0xff] %v481
          %484 = vst [vmem:[%s480 + $0x18] sm:$0xff] %v482
        $region76: #{tpu_custom_call.1} parent=67 // pred_fallthru
          _
        %v485 = vld [vmem:[%s440] sm:$0xff]
        %486 = vst [vmem:[#allocation2 + $0x4] sm:$0xff] %v485
        %v487 = vld [vmem:[#allocation2] sm:$0xff]
        %v488 = vld [vmem:[#allocation2 + $0x8] sm:$0xf]
        %v489 = vld [vmem:[%s2] sm:$0xff]
        %v490 = vld [vmem:[%s2 + $0x8] sm:$0xff]
        %v492 = vcombine.high %v487, %v487
        %v494 = vpack.c.bf16 %v487, %v487
        %v495 = vpack.c.bf16 %v492, %v492
        %v496 = vpack.c.bf16 %v488, %v488
        %v497 = vld [vmem:[%s1] sm:$0xf]
        %v498 = vld [vmem:[%s1 + $0x4] sm:$0xf]
        %v501 = vunpack.c.l.b16 %v497
        %v502 = vunpack.c.l.b16 %v498
        %v503 = vpack.c.b16 %v502, %v501
        %507 = vrot.lane.b32.xlu0 %v494, 4
        %v508 = vpop.permute.xlu0 %507
        %509 = vrot.lane.b32.xlu0 %v495, 4
        %v510 = vpop.permute.xlu0 %509
        %511 = vrot.lane.b32.xlu0 %v496, 4
        %v512 = vpop.permute.xlu0 %511
        %vm513 = vcmask 31744
        %v514 = vsel %vm513, %v508, %v510
        %v515 = vsel %vm513, %v510, %v512
        %vm516 = vcmask 31744
        %v518 = vsel %vm516, %v503, 0
        %vm520 = vcmask 1041408
        %v522 = vsel %vm520, %v514, 0
        %v525 = vsel %vm520, %v515, 0
        %527 = vmatprep.subr.bf16.mxu0 0
        %528 = vmatpush1.bf16.msra.mxu0 0
        %529 = vmatprep.subr.bf16.mxu0 0
        %530 = vmatpush1.bf16.msra.mxu0 0
        %531 = vmatprep.subr.bf16.mxu0 0
        %532 = vmatpush1.bf16.msra.mxu0 0
        %533 = vmatprep.subr.bf16.mxu0 0
        %534 = vmatpush1.bf16.msra.mxu0 0
        %535 = vmatprep.subr.bf16.mxu0 0
        %536 = vmatpush1.bf16.msra.mxu0 0
        %537 = vmatprep.subr.bf16.mxu0 0
        %538 = vmatpush1.bf16.msra.mxu0 0
        %539 = vmatprep.subr.bf16.mxu0 0
        %540 = vmatpush1.bf16.msra.mxu0 0
        %541 = vmatprep.subr.bf16.mxu0 %v525
        %542 = vmatpush1.bf16.msra.mxu0 %v522
        %543 = vmatprep.subr.bf16.mxu0 0
        %544 = vmatpush2.bf16.msra.mxu0 0
        %545 = vmatprep.subr.bf16.mxu0 0
        %546 = vmatpush2.bf16.msra.mxu0 0
        %547 = vmatprep.subr.bf16.mxu0 0
        %548 = vmatpush2.bf16.msra.mxu0 0
        %549 = vmatprep.subr.bf16.mxu0 0
        %550 = vmatpush2.bf16.msra.mxu0 0
        %551 = vmatprep.subr.bf16.mxu0 0
        %552 = vmatpush2.bf16.msra.mxu0 0
        %553 = vmatprep.subr.bf16.mxu0 0
        %554 = vmatpush2.bf16.msra.mxu0 0
        %555 = vmatprep.subr.bf16.mxu0 0
        %556 = vmatpush2.bf16.msra.mxu0 0
        %557 = vmatprep.subr.bf16.mxu0 0
        %558 = vmatpush2.bf16.msra.mxu0 0
        %559 = vmatprep.mubr.bf16.mxu0 0
        %560 = vmatmul.mubr.bf16.gmra.mxu0 %v518
        %v561 = vpop.f32.mrf.mxu0
        %v562 = vadd.f32 0.0, %v561
        %v563 = vpop.f32.mrf.mxu0
        %v564 = vadd.f32 0.0, %v563
        %v565 = vpop.f32.mrf.mxu0
        %v566 = vadd.f32 0.0, %v565
        %v567 = vpop.f32.mrf.mxu0
        %v568 = vadd.f32 0.0, %v567
        %569 = vdwg.mxu0
        %571 = vset.pattern.permute.xlu0 0
        %572 = vperm.xlu0 %571, %v489
        %v573 = vpop.permute.xlu0 %572
        %576 = vset.pattern.permute.xlu0 0
        %577 = vperm.xlu0 %576, %v490
        %v578 = vpop.permute.xlu0 %577
        %v580 = vadd.f32 %v573, %v562
        %v581 = vadd.f32 %v573, %v564
        %v582 = vadd.f32 %v578, %v566
        %v583 = vadd.f32 %v578, %v568
        %s584 = scalar_lea.vmem %s1, 8
        %v585 = vld [vmem:[%s584] sm:$0xf]
        %v586 = vld [vmem:[%s584 + $0x4] sm:$0xf]
        %v589 = vunpack.c.l.b16 %v585
        %v590 = vunpack.c.l.b16 %v586
        %v591 = vpack.c.b16 %v590, %v589
        %592 = vrot.lane.b32.xlu0 %v494, 3
        %v593 = vpop.permute.xlu0 %592
        %594 = vrot.lane.b32.xlu0 %v495, 3
        %v595 = vpop.permute.xlu0 %594
        %596 = vrot.lane.b32.xlu0 %v496, 3
        %v597 = vpop.permute.xlu0 %596
        %vm598 = vcmask 23552
        %v599 = vsel %vm598, %v593, %v595
        %v600 = vsel %vm598, %v595, %v597
        %v602 = vsel %vm516, %v591, 0
        %v605 = vsel %vm520, %v599, 0
        %v608 = vsel %vm520, %v600, 0
        %610 = vmatprep.subr.bf16.mxu0 0
        %611 = vmatpush1.bf16.msra.mxu0 0
        %612 = vmatprep.subr.bf16.mxu0 0
        %613 = vmatpush1.bf16.msra.mxu0 0
        %614 = vmatprep.subr.bf16.mxu0 0
        %615 = vmatpush1.bf16.msra.mxu0 0
        %616 = vmatprep.subr.bf16.mxu0 0
        %617 = vmatpush1.bf16.msra.mxu0 0
        %618 = vmatprep.subr.bf16.mxu0 0
        %619 = vmatpush1.bf16.msra.mxu0 0
        %620 = vmatprep.subr.bf16.mxu0 0
        %621 = vmatpush1.bf16.msra.mxu0 0
        %622 = vmatprep.subr.bf16.mxu0 0
        %623 = vmatpush1.bf16.msra.mxu0 0
        %624 = vmatprep.subr.bf16.mxu0 %v608
        %625 = vmatpush1.bf16.msra.mxu0 %v605
        %626 = vmatprep.subr.bf16.mxu0 0
        %627 = vmatpush2.bf16.msra.mxu0 0
        %628 = vmatprep.subr.bf16.mxu0 0
        %629 = vmatpush2.bf16.msra.mxu0 0
        %630 = vmatprep.subr.bf16.mxu0 0
        %631 = vmatpush2.bf16.msra.mxu0 0
        %632 = vmatprep.subr.bf16.mxu0 0
        %633 = vmatpush2.bf16.msra.mxu0 0
        %634 = vmatprep.subr.bf16.mxu0 0
        %635 = vmatpush2.bf16.msra.mxu0 0
        %636 = vmatprep.subr.bf16.mxu0 0
        %637 = vmatpush2.bf16.msra.mxu0 0
        %638 = vmatprep.subr.bf16.mxu0 0
        %639 = vmatpush2.bf16.msra.mxu0 0
        %640 = vmatprep.subr.bf16.mxu0 0
        %641 = vmatpush2.bf16.msra.mxu0 0
        %642 = vmatprep.mubr.bf16.mxu0 0
        %643 = vmatmul.mubr.bf16.gmra.mxu0 %v602
        %v644 = vpop.f32.mrf.mxu0
        %v645 = vadd.f32 0.0, %v644
        %v646 = vpop.f32.mrf.mxu0
        %v647 = vadd.f32 0.0, %v646
        %v648 = vpop.f32.mrf.mxu0
        %v649 = vadd.f32 0.0, %v648
        %v650 = vpop.f32.mrf.mxu0
        %v651 = vadd.f32 0.0, %v650
        %652 = vdwg.mxu0
        %v653 = vadd.f32 %v580, %v645
        %v654 = vadd.f32 %v581, %v647
        %v655 = vadd.f32 %v582, %v649
        %v656 = vadd.f32 %v583, %v651
        %s657 = scalar_lea.vmem %s1, 16
        %v658 = vld [vmem:[%s657] sm:$0xf]
        %v659 = vld [vmem:[%s657 + $0x4] sm:$0xf]
        %v662 = vunpack.c.l.b16 %v658
        %v663 = vunpack.c.l.b16 %v659
        %v664 = vpack.c.b16 %v663, %v662
        %665 = vrot.lane.b32.xlu0 %v494, 2
        %v666 = vpop.permute.xlu0 %665
        %667 = vrot.lane.b32.xlu0 %v495, 2
        %v668 = vpop.permute.xlu0 %667
        %669 = vrot.lane.b32.xlu0 %v496, 2
        %v670 = vpop.permute.xlu0 %669
        %vm671 = vcmask 15360
        %v672 = vsel %vm671, %v666, %v668
        %v673 = vsel %vm671, %v668, %v670
        %v675 = vsel %vm516, %v664, 0
        %v678 = vsel %vm520, %v672, 0
        %v681 = vsel %vm520, %v673, 0
        %683 = vmatprep.subr.bf16.mxu0 0
        %684 = vmatpush1.bf16.msra.mxu0 0
        %685 = vmatprep.subr.bf16.mxu0 0
        %686 = vmatpush1.bf16.msra.mxu0 0
        %687 = vmatprep.subr.bf16.mxu0 0
        %688 = vmatpush1.bf16.msra.mxu0 0
        %689 = vmatprep.subr.bf16.mxu0 0
        %690 = vmatpush1.bf16.msra.mxu0 0
        %691 = vmatprep.subr.bf16.mxu0 0
        %692 = vmatpush1.bf16.msra.mxu0 0
        %693 = vmatprep.subr.bf16.mxu0 0
        %694 = vmatpush1.bf16.msra.mxu0 0
        %695 = vmatprep.subr.bf16.mxu0 0
        %696 = vmatpush1.bf16.msra.mxu0 0
        %697 = vmatprep.subr.bf16.mxu0 %v681
        %698 = vmatpush1.bf16.msra.mxu0 %v678
        %699 = vmatprep.subr.bf16.mxu0 0
        %700 = vmatpush2.bf16.msra.mxu0 0
        %701 = vmatprep.subr.bf16.mxu0 0
        %702 = vmatpush2.bf16.msra.mxu0 0
        %703 = vmatprep.subr.bf16.mxu0 0
        %704 = vmatpush2.bf16.msra.mxu0 0
        %705 = vmatprep.subr.bf16.mxu0 0
        %706 = vmatpush2.bf16.msra.mxu0 0
        %707 = vmatprep.subr.bf16.mxu0 0
        %708 = vmatpush2.bf16.msra.mxu0 0
        %709 = vmatprep.subr.bf16.mxu0 0
        %710 = vmatpush2.bf16.msra.mxu0 0
        %711 = vmatprep.subr.bf16.mxu0 0
        %712 = vmatpush2.bf16.msra.mxu0 0
        %713 = vmatprep.subr.bf16.mxu0 0
        %714 = vmatpush2.bf16.msra.mxu0 0
        %715 = vmatprep.mubr.bf16.mxu0 0
        %716 = vmatmul.mubr.bf16.gmra.mxu0 %v675
        %v717 = vpop.f32.mrf.mxu0
        %v718 = vadd.f32 0.0, %v717
        %v719 = vpop.f32.mrf.mxu0
        %v720 = vadd.f32 0.0, %v719
        %v721 = vpop.f32.mrf.mxu0
        %v722 = vadd.f32 0.0, %v721
        %v723 = vpop.f32.mrf.mxu0
        %v724 = vadd.f32 0.0, %v723
        %725 = vdwg.mxu0
        %v726 = vadd.f32 %v653, %v718
        %v727 = vadd.f32 %v654, %v720
        %v728 = vadd.f32 %v655, %v722
        %v729 = vadd.f32 %v656, %v724
        %s730 = scalar_lea.vmem %s1, 24
        %v731 = vld [vmem:[%s730] sm:$0xf]
        %v732 = vld [vmem:[%s730 + $0x4] sm:$0xf]
        %v735 = vunpack.c.l.b16 %v731
        %v736 = vunpack.c.l.b16 %v732
        %v737 = vpack.c.b16 %v736, %v735
        %738 = vrot.lane.b32.xlu0 %v494, 1
        %v739 = vpop.permute.xlu0 %738
        %740 = vrot.lane.b32.xlu0 %v495, 1
        %v741 = vpop.permute.xlu0 %740
        %742 = vrot.lane.b32.xlu0 %v496, 1
        %v743 = vpop.permute.xlu0 %742
        %vm744 = vcmask 7168
        %v745 = vsel %vm744, %v739, %v741
        %v746 = vsel %vm744, %v741, %v743
        %v748 = vsel %vm516, %v737, 0
        %v751 = vsel %vm520, %v745, 0
        %v754 = vsel %vm520, %v746, 0
        %756 = vmatprep.subr.bf16.mxu0 0
        %757 = vmatpush1.bf16.msra.mxu0 0
        %758 = vmatprep.subr.bf16.mxu0 0
        %759 = vmatpush1.bf16.msra.mxu0 0
        %760 = vmatprep.subr.bf16.mxu0 0
        %761 = vmatpush1.bf16.msra.mxu0 0
        %762 = vmatprep.subr.bf16.mxu0 0
        %763 = vmatpush1.bf16.msra.mxu0 0
        %764 = vmatprep.subr.bf16.mxu0 0
        %765 = vmatpush1.bf16.msra.mxu0 0
        %766 = vmatprep.subr.bf16.mxu0 0
        %767 = vmatpush1.bf16.msra.mxu0 0
        %768 = vmatprep.subr.bf16.mxu0 0
        %769 = vmatpush1.bf16.msra.mxu0 0
        %770 = vmatprep.subr.bf16.mxu0 %v754
        %771 = vmatpush1.bf16.msra.mxu0 %v751
        %772 = vmatprep.subr.bf16.mxu0 0
        %773 = vmatpush2.bf16.msra.mxu0 0
        %774 = vmatprep.subr.bf16.mxu0 0
        %775 = vmatpush2.bf16.msra.mxu0 0
        %776 = vmatprep.subr.bf16.mxu0 0
        %777 = vmatpush2.bf16.msra.mxu0 0
        %778 = vmatprep.subr.bf16.mxu0 0
        %779 = vmatpush2.bf16.msra.mxu0 0
        %780 = vmatprep.subr.bf16.mxu0 0
        %781 = vmatpush2.bf16.msra.mxu0 0
        %782 = vmatprep.subr.bf16.mxu0 0
        %783 = vmatpush2.bf16.msra.mxu0 0
        %784 = vmatprep.subr.bf16.mxu0 0
        %785 = vmatpush2.bf16.msra.mxu0 0
        %786 = vmatprep.subr.bf16.mxu0 0
        %787 = vmatpush2.bf16.msra.mxu0 0
        %788 = vmatprep.mubr.bf16.mxu0 0
        %789 = vmatmul.mubr.bf16.gmra.mxu0 %v748
        %v790 = vpop.f32.mrf.mxu0
        %v791 = vadd.f32 0.0, %v790
        %v792 = vpop.f32.mrf.mxu0
        %v793 = vadd.f32 0.0, %v792
        %v794 = vpop.f32.mrf.mxu0
        %v795 = vadd.f32 0.0, %v794
        %v796 = vpop.f32.mrf.mxu0
        %v797 = vadd.f32 0.0, %v796
        %798 = vdwg.mxu0
        %v799 = vadd.f32 %v726, %v791
        %v800 = vadd.f32 %v727, %v793
        %v801 = vadd.f32 %v728, %v795
        %v802 = vadd.f32 %v729, %v797
        %v803 = vld [vmem:[%s3] sm:$0xf]
        %v804 = vld [vmem:[%s3 + $0x4] sm:$0xf]
        %v805 = vpack.c.bf16 %v801, %v799
        %v806 = vpack.c.bf16 %v802, %v800
        %v807 = vld [vmem:[%s4] sm:$0xff]
        %v808 = vld [vmem:[%s4 + $0x8] sm:$0xff]
        %810 = vset.pattern.permute.xlu0 0
        %811 = vperm.xlu0 %810, %v807
        %v812 = vpop.permute.xlu0 %811
        %815 = vset.pattern.permute.xlu0 0
        %816 = vperm.xlu0 %815, %v808
        %v817 = vpop.permute.xlu0 %816
        %v821 = vunpack.c.l.b16 %v803
        %v822 = vunpack.c.l.b16 %v804
        %v823 = vpack.c.b16 %v822, %v821
        %vm824 = vcmask 130048
        %v826 = vsel %vm824, %v823, 0
        %828 = vmatprep.subr.bf16.mxu0 0
        %829 = vmatpush1.bf16.msra.mxu0 0
        %830 = vmatprep.subr.bf16.mxu0 0
        %831 = vmatpush1.bf16.msra.mxu0 0
        %832 = vmatprep.subr.bf16.mxu0 0
        %833 = vmatpush1.bf16.msra.mxu0 0
        %834 = vmatprep.subr.bf16.mxu0 0
        %835 = vmatpush1.bf16.msra.mxu0 0
        %836 = vmatprep.subr.bf16.mxu0 0
        %837 = vmatpush1.bf16.msra.mxu0 0
        %838 = vmatprep.subr.bf16.mxu0 0
        %839 = vmatpush1.bf16.msra.mxu0 0
        %840 = vmatprep.subr.bf16.mxu0 0
        %841 = vmatpush1.bf16.msra.mxu0 0
        %842 = vmatprep.subr.bf16.mxu0 %v806
        %843 = vmatpush1.bf16.msra.mxu0 %v805
        %844 = vmatprep.subr.bf16.mxu0 0
        %845 = vmatpush2.bf16.msra.mxu0 0
        %846 = vmatprep.subr.bf16.mxu0 0
        %847 = vmatpush2.bf16.msra.mxu0 0
        %848 = vmatprep.subr.bf16.mxu0 0
        %849 = vmatpush2.bf16.msra.mxu0 0
        %850 = vmatprep.subr.bf16.mxu0 0
        %851 = vmatpush2.bf16.msra.mxu0 0
        %852 = vmatprep.subr.bf16.mxu0 0
        %853 = vmatpush2.bf16.msra.mxu0 0
        %854 = vmatprep.subr.bf16.mxu0 0
        %855 = vmatpush2.bf16.msra.mxu0 0
        %856 = vmatprep.subr.bf16.mxu0 0
        %857 = vmatpush2.bf16.msra.mxu0 0
        %858 = vmatprep.subr.bf16.mxu0 0
        %859 = vmatpush2.bf16.msra.mxu0 0
        %860 = vmatprep.mubr.bf16.mxu0 0
        %861 = vmatmul.mubr.bf16.gmra.mxu0 %v826
        %v862 = vpop.f32.mrf.mxu0
        %v863 = vadd.f32 %v812, %v862
        %v864 = vpop.f32.mrf.mxu0
        %v865 = vadd.f32 %v812, %v864
        %v866 = vpop.f32.mrf.mxu0
        %v867 = vadd.f32 %v817, %v866
        %v868 = vpop.f32.mrf.mxu0
        %v869 = vadd.f32 %v817, %v868
        %870 = vdwg.mxu0
        %871 = vst [vmem:[#allocation3 + $0x8] sm:$0xff] %v799
        %872 = vst [vmem:[#allocation3 + $0x10] sm:$0xff] %v800
        %873 = vst [vmem:[#allocation3 + $0x20] sm:$0xff] %v801
        %874 = vst [vmem:[#allocation3 + $0x28] sm:$0xff] %v802
        %v875 = vld [vmem:[#allocation3] sm:$0xff]
        %v876 = vld [vmem:[#allocation3 + $0x8] sm:$0xff]
        %v877 = vld [vmem:[#allocation3 + $0x10] sm:$0xff]
        %v878 = vld [vmem:[#allocation3 + $0x18] sm:$0xff]
        %v879 = vld [vmem:[#allocation3 + $0x20] sm:$0xff]
        %v880 = vld [vmem:[#allocation3 + $0x28] sm:$0xff]
        %v881 = vld [vmem:[%s6] sm:$0xff]
        %v882 = vld [vmem:[%s6 + $0x8] sm:$0xff]
        %v883 = vpack.c.bf16 %v878, %v875
        %v884 = vpack.c.bf16 %v879, %v876
        %v885 = vpack.c.bf16 %v880, %v877
        %v886 = vld [vmem:[%s5] sm:$0xf]
        %v887 = vld [vmem:[%s5 + $0x4] sm:$0xf]
        %v890 = vunpack.c.l.b16 %v886
        %v891 = vunpack.c.l.b16 %v887
        %v892 = vpack.c.b16 %v891, %v890
        %896 = vrot.lane.b32.xlu0 %v883, 1
        %v897 = vpop.permute.xlu0 %896
        %898 = vrot.lane.b32.xlu0 %v884, 1
        %v899 = vpop.permute.xlu0 %898
        %900 = vrot.lane.b32.xlu0 %v885, 1
        %v901 = vpop.permute.xlu0 %900
        %v902 = vsel %vm744, %v897, %v899
        %v903 = vsel %vm744, %v899, %v901
        %v907 = vsel %vm824, %v892, 0
        %909 = vmatprep.subr.bf16.mxu0 0
        %910 = vmatpush1.bf16.msra.mxu0 0
        %911 = vmatprep.subr.bf16.mxu0 0
        %912 = vmatpush1.bf16.msra.mxu0 0
        %913 = vmatprep.subr.bf16.mxu0 0
        %914 = vmatpush1.bf16.msra.mxu0 0
        %915 = vmatprep.subr.bf16.mxu0 0
        %916 = vmatpush1.bf16.msra.mxu0 0
        %917 = vmatprep.subr.bf16.mxu0 0
        %918 = vmatpush1.bf16.msra.mxu0 0
        %919 = vmatprep.subr.bf16.mxu0 0
        %920 = vmatpush1.bf16.msra.mxu0 0
        %921 = vmatprep.subr.bf16.mxu0 0
        %922 = vmatpush1.bf16.msra.mxu0 0
        %923 = vmatprep.subr.bf16.mxu0 %v903
        %924 = vmatpush1.bf16.msra.mxu0 %v902
        %925 = vmatprep.subr.bf16.mxu0 0
        %926 = vmatpush2.bf16.msra.mxu0 0
        %927 = vmatprep.subr.bf16.mxu0 0
        %928 = vmatpush2.bf16.msra.mxu0 0
        %929 = vmatprep.subr.bf16.mxu0 0
        %930 = vmatpush2.bf16.msra.mxu0 0
        %931 = vmatprep.subr.bf16.mxu0 0
        %932 = vmatpush2.bf16.msra.mxu0 0
        %933 = vmatprep.subr.bf16.mxu0 0
        %934 = vmatpush2.bf16.msra.mxu0 0
        %935 = vmatprep.subr.bf16.mxu0 0
        %936 = vmatpush2.bf16.msra.mxu0 0
        %937 = vmatprep.subr.bf16.mxu0 0
        %938 = vmatpush2.bf16.msra.mxu0 0
        %939 = vmatprep.subr.bf16.mxu0 0
        %940 = vmatpush2.bf16.msra.mxu0 0
        %941 = vmatprep.mubr.bf16.mxu0 0
        %942 = vmatmul.mubr.bf16.gmra.mxu0 %v907
        %v943 = vpop.f32.mrf.mxu0
        %v944 = vadd.f32 0.0, %v943
        %v945 = vpop.f32.mrf.mxu0
        %v946 = vadd.f32 0.0, %v945
        %v947 = vpop.f32.mrf.mxu0
        %v948 = vadd.f32 0.0, %v947
        %v949 = vpop.f32.mrf.mxu0
        %v950 = vadd.f32 0.0, %v949
        %951 = vdwg.mxu0
        %953 = vset.pattern.permute.xlu0 0
        %954 = vperm.xlu0 %953, %v881
        %v955 = vpop.permute.xlu0 %954
        %958 = vset.pattern.permute.xlu0 0
        %959 = vperm.xlu0 %958, %v882
        %v960 = vpop.permute.xlu0 %959
        %v962 = vadd.f32 %v955, %v944
        %v963 = vadd.f32 %v955, %v946
        %v964 = vadd.f32 %v960, %v948
        %v965 = vadd.f32 %v960, %v950
        %s966 = scalar_lea.vmem %s5, 8
        %v967 = vld [vmem:[%s966] sm:$0xf]
        %v968 = vld [vmem:[%s966 + $0x4] sm:$0xf]
        %v971 = vunpack.c.l.b16 %v967
        %v972 = vunpack.c.l.b16 %v968
        %v973 = vpack.c.b16 %v972, %v971
        %v975 = vsel %vm824, %v973, 0
        %977 = vmatprep.subr.bf16.mxu0 0
        %978 = vmatpush1.bf16.msra.mxu0 0
        %979 = vmatprep.subr.bf16.mxu0 0
        %980 = vmatpush1.bf16.msra.mxu0 0
        %981 = vmatprep.subr.bf16.mxu0 0
        %982 = vmatpush1.bf16.msra.mxu0 0
        %983 = vmatprep.subr.bf16.mxu0 0
        %984 = vmatpush1.bf16.msra.mxu0 0
        %985 = vmatprep.subr.bf16.mxu0 0
        %986 = vmatpush1.bf16.msra.mxu0 0
        %987 = vmatprep.subr.bf16.mxu0 0
        %988 = vmatpush1.bf16.msra.mxu0 0
        %989 = vmatprep.subr.bf16.mxu0 0
        %990 = vmatpush1.bf16.msra.mxu0 0
        %991 = vmatprep.subr.bf16.mxu0 %v806
        %992 = vmatpush1.bf16.msra.mxu0 %v805
        %993 = vmatprep.subr.bf16.mxu0 0
        %994 = vmatpush2.bf16.msra.mxu0 0
        %995 = vmatprep.subr.bf16.mxu0 0
        %996 = vmatpush2.bf16.msra.mxu0 0
        %997 = vmatprep.subr.bf16.mxu0 0
        %998 = vmatpush2.bf16.msra.mxu0 0
        %999 = vmatprep.subr.bf16.mxu0 0
        %1000 = vmatpush2.bf16.msra.mxu0 0
        %1001 = vmatprep.subr.bf16.mxu0 0
        %1002 = vmatpush2.bf16.msra.mxu0 0
        %1003 = vmatprep.subr.bf16.mxu0 0
        %1004 = vmatpush2.bf16.msra.mxu0 0
        %1005 = vmatprep.subr.bf16.mxu0 0
        %1006 = vmatpush2.bf16.msra.mxu0 0
        %1007 = vmatprep.subr.bf16.mxu0 0
        %1008 = vmatpush2.bf16.msra.mxu0 0
        %1009 = vmatprep.mubr.bf16.mxu0 0
        %1010 = vmatmul.mubr.bf16.gmra.mxu0 %v975
        %v1011 = vpop.f32.mrf.mxu0
        %v1012 = vadd.f32 0.0, %v1011
        %v1013 = vpop.f32.mrf.mxu0
        %v1014 = vadd.f32 0.0, %v1013
        %v1015 = vpop.f32.mrf.mxu0
        %v1016 = vadd.f32 0.0, %v1015
        %v1017 = vpop.f32.mrf.mxu0
        %v1018 = vadd.f32 0.0, %v1017
        %1019 = vdwg.mxu0
        %v1020 = vadd.f32 %v962, %v1012
        %v1021 = vadd.f32 %v963, %v1014
        %v1022 = vadd.f32 %v964, %v1016
        %v1023 = vadd.f32 %v965, %v1018
        %v1024 = vxor.u32 %v1020, 2147483648
        %v1025 = vxor.u32 %v1021, 2147483648
        %v1026 = vmul.f32 %v1024, 1.442695
        %v1027 = vpow.pop %v1026
        %v1028 = vmul.f32 %v1025, 1.442695
        %v1029 = vpow.pop %v1028
        %v1030 = vadd.f32 %v1027, 1.0
        %v1031 = vadd.f32 %v1029, 1.0
        %v1032 = vrcp.pop %v1030
        %v1033 = vmul.f32 1.0, %v1032
        %v1034 = vrcp.pop %v1031
        %v1035 = vmul.f32 1.0, %v1034
        %v1036 = vtanh.pop %v1022
        %v1037 = vtanh.pop %v1023
        %v1038 = vmul.f32 %v1033, %v1036
        %v1039 = vmul.f32 %v1035, %v1037
        %v1040 = vpack.c.bf16 %v1038, %v1038
        %v1041 = vpack.c.bf16 %v1039, %v1039
        %v1042 = vld [vmem:[%s7] sm:$0xf]
        %v1043 = vld [vmem:[%s7 + $0x4] sm:$0xf]
        %v1044 = vld [vmem:[%s7 + $0x8] sm:$0xf]
        %v1045 = vld [vmem:[%s7 + $0xc] sm:$0xf]
        %v1050 = vunpack.c.l.b16 %v1042
        %v1051 = vunpack.c.l.b16 %v1043
        %v1052 = vunpack.c.l.b16 %v1044
        %v1053 = vunpack.c.l.b16 %v1045
        %v1054 = vpack.c.b16 %v1051, %v1050
        %v1055 = vpack.c.b16 %v1053, %v1052
        %vm1056 = vcmask 64512
        %v1058 = vsel %vm1056, %v1054, 0
        %v1061 = vsel %vm1056, %v1055, 0
        %vm1063 = vcmask 1043456
        %v1065 = vsel %vm1063, %v1040, 0
        %v1068 = vsel %vm1063, %v1041, 0
        %1070 = vmatprep.subr.bf16.mxu0 0
        %1071 = vmatpush1.bf16.msra.mxu0 0
        %1072 = vmatprep.subr.bf16.mxu0 0
        %1073 = vmatpush1.bf16.msra.mxu0 0
        %1074 = vmatprep.subr.bf16.mxu0 0
        %1075 = vmatpush1.bf16.msra.mxu0 0
        %1076 = vmatprep.subr.bf16.mxu0 0
        %1077 = vmatpush1.bf16.msra.mxu0 0
        %1078 = vmatprep.subr.bf16.mxu0 0
        %1079 = vmatpush1.bf16.msra.mxu0 0
        %1080 = vmatprep.subr.bf16.mxu0 0
        %1081 = vmatpush1.bf16.msra.mxu0 0
        %1082 = vmatprep.subr.bf16.mxu0 0
        %1083 = vmatpush1.bf16.msra.mxu0 0
        %1084 = vmatprep.subr.bf16.mxu0 %v1068
        %1085 = vmatpush1.bf16.msra.mxu0 %v1065
        %1086 = vmatprep.subr.bf16.mxu0 0
        %1087 = vmatpush2.bf16.msra.mxu0 0
        %1088 = vmatprep.subr.bf16.mxu0 0
        %1089 = vmatpush2.bf16.msra.mxu0 0
        %1090 = vmatprep.subr.bf16.mxu0 0
        %1091 = vmatpush2.bf16.msra.mxu0 0
        %1092 = vmatprep.subr.bf16.mxu0 0
        %1093 = vmatpush2.bf16.msra.mxu0 0
        %1094 = vmatprep.subr.bf16.mxu0 0
        %1095 = vmatpush2.bf16.msra.mxu0 0
        %1096 = vmatprep.subr.bf16.mxu0 0
        %1097 = vmatpush2.bf16.msra.mxu0 0
        %1098 = vmatprep.subr.bf16.mxu0 0
        %1099 = vmatpush2.bf16.msra.mxu0 0
        %1100 = vmatprep.subr.bf16.mxu0 0
        %1101 = vmatpush2.bf16.msra.mxu0 0
        %1102 = vmatprep.mubr.bf16.mxu0 0
        %1103 = vmatmul.mubr.bf16.gmra.mxu0 %v1058
        %v1104 = vpop.f32.mrf.mxu0
        %v1105 = vadd.f32 0.0, %v1104
        %v1106 = vpop.f32.mrf.mxu0
        %v1107 = vadd.f32 0.0, %v1106
        %v1108 = vpop.f32.mrf.mxu0
        %v1109 = vadd.f32 0.0, %v1108
        %v1110 = vpop.f32.mrf.mxu0
        %v1111 = vadd.f32 0.0, %v1110
        %1112 = vmatprep.mubr.bf16.mxu0 0
        %1113 = vmatmul.mubr.bf16.gmra.mxu0 %v1061
        %v1114 = vpop.f32.mrf.mxu0
        %v1115 = vadd.f32 0.0, %v1114
        %v1116 = vpop.f32.mrf.mxu0
        %v1117 = vadd.f32 0.0, %v1116
        %v1118 = vpop.f32.mrf.mxu0
        %v1119 = vadd.f32 0.0, %v1118
        %v1120 = vpop.f32.mrf.mxu0
        %v1121 = vadd.f32 0.0, %v1120
        %1122 = vdwg.mxu0
        %v1123 = vadd.f32 %v863, %v1105
        %v1124 = vadd.f32 %v865, %v1107
        %v1125 = vadd.f32 %v867, %v1109
        %v1126 = vadd.f32 %v869, %v1111
        %v1127 = vadd.f32 %v799, %v1115
        %v1128 = vadd.f32 %v800, %v1117
        %v1129 = vadd.f32 %v801, %v1119
        %v1130 = vadd.f32 %v802, %v1121
        %s1131 = scalar_lea.vmem [#allocation3], 48
        %1132 = vst [vmem:[%s1131 + $0x8] sm:$0xff] %v1127
        %1133 = vst [vmem:[%s1131 + $0x10] sm:$0xff] %v1128
        %1134 = vst [vmem:[%s1131 + $0x20] sm:$0xff] %v1129
        %1135 = vst [vmem:[%s1131 + $0x28] sm:$0xff] %v1130
        %v1136 = vld [vmem:[%s1131] sm:$0xff]
        %v1137 = vld [vmem:[%s1131 + $0x8] sm:$0xff]
        %v1138 = vld [vmem:[%s1131 + $0x10] sm:$0xff]
        %v1139 = vld [vmem:[%s1131 + $0x18] sm:$0xff]
        %v1140 = vld [vmem:[%s1131 + $0x20] sm:$0xff]
        %v1141 = vld [vmem:[%s1131 + $0x28] sm:$0xff]
        %v1142 = vpack.c.bf16 %v1129, %v1127
        %v1143 = vpack.c.bf16 %v1130, %v1128
        %s1144 = scalar_lea.vmem %s6, 16
        %v1145 = vld [vmem:[%s1144] sm:$0xff]
        %v1146 = vld [vmem:[%s1144 + $0x8] sm:$0xff]
        %v1147 = vpack.c.bf16 %v1139, %v1136
        %v1148 = vpack.c.bf16 %v1140, %v1137
        %v1149 = vpack.c.bf16 %v1141, %v1138
        %s1150 = scalar_lea.vmem %s5, 16
        %v1151 = vld [vmem:[%s1150] sm:$0xf]
        %v1152 = vld [vmem:[%s1150 + $0x4] sm:$0xf]
        %v1155 = vunpack.c.l.b16 %v1151
        %v1156 = vunpack.c.l.b16 %v1152
        %v1157 = vpack.c.b16 %v1156, %v1155
        %1161 = vrot.lane.b32.xlu0 %v1147, 2
        %v1162 = vpop.permute.xlu0 %1161
        %1163 = vrot.lane.b32.xlu0 %v1148, 2
        %v1164 = vpop.permute.xlu0 %1163
        %1165 = vrot.lane.b32.xlu0 %v1149, 2
        %v1166 = vpop.permute.xlu0 %1165
        %v1167 = vsel %vm671, %v1162, %v1164
        %v1168 = vsel %vm671, %v1164, %v1166
        %v1172 = vsel %vm824, %v1157, 0
        %1174 = vmatprep.subr.bf16.mxu0 0
        %1175 = vmatpush1.bf16.msra.mxu0 0
        %1176 = vmatprep.subr.bf16.mxu0 0
        %1177 = vmatpush1.bf16.msra.mxu0 0
        %1178 = vmatprep.subr.bf16.mxu0 0
        %1179 = vmatpush1.bf16.msra.mxu0 0
        %1180 = vmatprep.subr.bf16.mxu0 0
        %1181 = vmatpush1.bf16.msra.mxu0 0
        %1182 = vmatprep.subr.bf16.mxu0 0
        %1183 = vmatpush1.bf16.msra.mxu0 0
        %1184 = vmatprep.subr.bf16.mxu0 0
        %1185 = vmatpush1.bf16.msra.mxu0 0
        %1186 = vmatprep.subr.bf16.mxu0 0
        %1187 = vmatpush1.bf16.msra.mxu0 0
        %1188 = vmatprep.subr.bf16.mxu0 %v1168
        %1189 = vmatpush1.bf16.msra.mxu0 %v1167
        %1190 = vmatprep.subr.bf16.mxu0 0
        %1191 = vmatpush2.bf16.msra.mxu0 0
        %1192 = vmatprep.subr.bf16.mxu0 0
        %1193 = vmatpush2.bf16.msra.mxu0 0
        %1194 = vmatprep.subr.bf16.mxu0 0
        %1195 = vmatpush2.bf16.msra.mxu0 0
        %1196 = vmatprep.subr.bf16.mxu0 0
        %1197 = vmatpush2.bf16.msra.mxu0 0
        %1198 = vmatprep.subr.bf16.mxu0 0
        %1199 = vmatpush2.bf16.msra.mxu0 0
        %1200 = vmatprep.subr.bf16.mxu0 0
        %1201 = vmatpush2.bf16.msra.mxu0 0
        %1202 = vmatprep.subr.bf16.mxu0 0
        %1203 = vmatpush2.bf16.msra.mxu0 0
        %1204 = vmatprep.subr.bf16.mxu0 0
        %1205 = vmatpush2.bf16.msra.mxu0 0
        %1206 = vmatprep.mubr.bf16.mxu0 0
        %1207 = vmatmul.mubr.bf16.gmra.mxu0 %v1172
        %v1208 = vpop.f32.mrf.mxu0
        %v1209 = vadd.f32 0.0, %v1208
        %v1210 = vpop.f32.mrf.mxu0
        %v1211 = vadd.f32 0.0, %v1210
        %v1212 = vpop.f32.mrf.mxu0
        %v1213 = vadd.f32 0.0, %v1212
        %v1214 = vpop.f32.mrf.mxu0
        %v1215 = vadd.f32 0.0, %v1214
        %1216 = vdwg.mxu0
        %1218 = vset.pattern.permute.xlu0 0
        %1219 = vperm.xlu0 %1218, %v1145
        %v1220 = vpop.permute.xlu0 %1219
        %1223 = vset.pattern.permute.xlu0 0
        %1224 = vperm.xlu0 %1223, %v1146
        %v1225 = vpop.permute.xlu0 %1224
        %v1227 = vadd.f32 %v1220, %v1209
        %v1228 = vadd.f32 %v1220, %v1211
        %v1229 = vadd.f32 %v1225, %v1213
        %v1230 = vadd.f32 %v1225, %v1215
        %s1231 = scalar_lea.vmem %s5, 24
        %v1232 = vld [vmem:[%s1231] sm:$0xf]
        %v1233 = vld [vmem:[%s1231 + $0x4] sm:$0xf]
        %v1236 = vunpack.c.l.b16 %v1232
        %v1237 = vunpack.c.l.b16 %v1233
        %v1238 = vpack.c.b16 %v1237, %v1236
        %v1240 = vsel %vm824, %v1238, 0
        %1242 = vmatprep.subr.bf16.mxu0 0
        %1243 = vmatpush1.bf16.msra.mxu0 0
        %1244 = vmatprep.subr.bf16.mxu0 0
        %1245 = vmatpush1.bf16.msra.mxu0 0
        %1246 = vmatprep.subr.bf16.mxu0 0
        %1247 = vmatpush1.bf16.msra.mxu0 0
        %1248 = vmatprep.subr.bf16.mxu0 0
        %1249 = vmatpush1.bf16.msra.mxu0 0
        %1250 = vmatprep.subr.bf16.mxu0 0
        %1251 = vmatpush1.bf16.msra.mxu0 0
        %1252 = vmatprep.subr.bf16.mxu0 0
        %1253 = vmatpush1.bf16.msra.mxu0 0
        %1254 = vmatprep.subr.bf16.mxu0 0
        %1255 = vmatpush1.bf16.msra.mxu0 0
        %1256 = vmatprep.subr.bf16.mxu0 %v1143
        %1257 = vmatpush1.bf16.msra.mxu0 %v1142
        %1258 = vmatprep.subr.bf16.mxu0 0
        %1259 = vmatpush2.bf16.msra.mxu0 0
        %1260 = vmatprep.subr.bf16.mxu0 0
        %1261 = vmatpush2.bf16.msra.mxu0 0
        %1262 = vmatprep.subr.bf16.mxu0 0
        %1263 = vmatpush2.bf16.msra.mxu0 0
        %1264 = vmatprep.subr.bf16.mxu0 0
        %1265 = vmatpush2.bf16.msra.mxu0 0
        %1266 = vmatprep.subr.bf16.mxu0 0
        %1267 = vmatpush2.bf16.msra.mxu0 0
        %1268 = vmatprep.subr.bf16.mxu0 0
        %1269 = vmatpush2.bf16.msra.mxu0 0
        %1270 = vmatprep.subr.bf16.mxu0 0
        %1271 = vmatpush2.bf16.msra.mxu0 0
        %1272 = vmatprep.subr.bf16.mxu0 0
        %1273 = vmatpush2.bf16.msra.mxu0 0
        %1274 = vmatprep.mubr.bf16.mxu0 0
        %1275 = vmatmul.mubr.bf16.gmra.mxu0 %v1240
        %v1276 = vpop.f32.mrf.mxu0
        %v1277 = vadd.f32 0.0, %v1276
        %v1278 = vpop.f32.mrf.mxu0
        %v1279 = vadd.f32 0.0, %v1278
        %v1280 = vpop.f32.mrf.mxu0
        %v1281 = vadd.f32 0.0, %v1280
        %v1282 = vpop.f32.mrf.mxu0
        %v1283 = vadd.f32 0.0, %v1282
        %1284 = vdwg.mxu0
        %v1285 = vadd.f32 %v1227, %v1277
        %v1286 = vadd.f32 %v1228, %v1279
        %v1287 = vadd.f32 %v1229, %v1281
        %v1288 = vadd.f32 %v1230, %v1283
        %v1289 = vxor.u32 %v1285, 2147483648
        %v1290 = vxor.u32 %v1286, 2147483648
        %v1291 = vmul.f32 %v1289, 1.442695
        %v1292 = vpow.pop %v1291
        %v1293 = vmul.f32 %v1290, 1.442695
        %v1294 = vpow.pop %v1293
        %v1295 = vadd.f32 %v1292, 1.0
        %v1296 = vadd.f32 %v1294, 1.0
        %v1297 = vrcp.pop %v1295
        %v1298 = vmul.f32 1.0, %v1297
        %v1299 = vrcp.pop %v1296
        %v1300 = vmul.f32 1.0, %v1299
        %v1301 = vtanh.pop %v1287
        %v1302 = vtanh.pop %v1288
        %v1303 = vmul.f32 %v1298, %v1301
        %v1304 = vmul.f32 %v1300, %v1302
        %v1305 = vpack.c.bf16 %v1303, %v1303
        %v1306 = vpack.c.bf16 %v1304, %v1304
        %s1307 = scalar_lea.vmem %s7, 16
        %v1308 = vld [vmem:[%s1307] sm:$0xf]
        %v1309 = vld [vmem:[%s1307 + $0x4] sm:$0xf]
        %v1310 = vld [vmem:[%s1307 + $0x8] sm:$0xf]
        %v1311 = vld [vmem:[%s1307 + $0xc] sm:$0xf]
        %v1316 = vunpack.c.l.b16 %v1308
        %v1317 = vunpack.c.l.b16 %v1309
        %v1318 = vunpack.c.l.b16 %v1310
        %v1319 = vunpack.c.l.b16 %v1311
        %v1320 = vpack.c.b16 %v1317, %v1316
        %v1321 = vpack.c.b16 %v1319, %v1318
        %v1323 = vsel %vm1056, %v1320, 0
        %v1326 = vsel %vm1056, %v1321, 0
        %v1329 = vsel %vm1063, %v1305, 0
        %v1332 = vsel %vm1063, %v1306, 0
        %1334 = vmatprep.subr.bf16.mxu0 0
        %1335 = vmatpush1.bf16.msra.mxu0 0
        %1336 = vmatprep.subr.bf16.mxu0 0
        %1337 = vmatpush1.bf16.msra.mxu0 0
        %1338 = vmatprep.subr.bf16.mxu0 0
        %1339 = vmatpush1.bf16.msra.mxu0 0
        %1340 = vmatprep.subr.bf16.mxu0 0
        %1341 = vmatpush1.bf16.msra.mxu0 0
        %1342 = vmatprep.subr.bf16.mxu0 0
        %1343 = vmatpush1.bf16.msra.mxu0 0
        %1344 = vmatprep.subr.bf16.mxu0 0
        %1345 = vmatpush1.bf16.msra.mxu0 0
        %1346 = vmatprep.subr.bf16.mxu0 0
        %1347 = vmatpush1.bf16.msra.mxu0 0
        %1348 = vmatprep.subr.bf16.mxu0 %v1332
        %1349 = vmatpush1.bf16.msra.mxu0 %v1329
        %1350 = vmatprep.subr.bf16.mxu0 0
        %1351 = vmatpush2.bf16.msra.mxu0 0
        %1352 = vmatprep.subr.bf16.mxu0 0
        %1353 = vmatpush2.bf16.msra.mxu0 0
        %1354 = vmatprep.subr.bf16.mxu0 0
        %1355 = vmatpush2.bf16.msra.mxu0 0
        %1356 = vmatprep.subr.bf16.mxu0 0
        %1357 = vmatpush2.bf16.msra.mxu0 0
        %1358 = vmatprep.subr.bf16.mxu0 0
        %1359 = vmatpush2.bf16.msra.mxu0 0
        %1360 = vmatprep.subr.bf16.mxu0 0
        %1361 = vmatpush2.bf16.msra.mxu0 0
        %1362 = vmatprep.subr.bf16.mxu0 0
        %1363 = vmatpush2.bf16.msra.mxu0 0
        %1364 = vmatprep.subr.bf16.mxu0 0
        %1365 = vmatpush2.bf16.msra.mxu0 0
        %1366 = vmatprep.mubr.bf16.mxu0 0
        %1367 = vmatmul.mubr.bf16.gmra.mxu0 %v1323
        %v1368 = vpop.f32.mrf.mxu0
        %v1369 = vadd.f32 0.0, %v1368
        %v1370 = vpop.f32.mrf.mxu0
        %v1371 = vadd.f32 0.0, %v1370
        %v1372 = vpop.f32.mrf.mxu0
        %v1373 = vadd.f32 0.0, %v1372
        %v1374 = vpop.f32.mrf.mxu0
        %v1375 = vadd.f32 0.0, %v1374
        %1376 = vmatprep.mubr.bf16.mxu0 0
        %1377 = vmatmul.mubr.bf16.gmra.mxu0 %v1326
        %v1378 = vpop.f32.mrf.mxu0
        %v1379 = vadd.f32 0.0, %v1378
        %v1380 = vpop.f32.mrf.mxu0
        %v1381 = vadd.f32 0.0, %v1380
        %v1382 = vpop.f32.mrf.mxu0
        %v1383 = vadd.f32 0.0, %v1382
        %v1384 = vpop.f32.mrf.mxu0
        %v1385 = vadd.f32 0.0, %v1384
        %1386 = vdwg.mxu0
        %v1387 = vadd.f32 %v1123, %v1369
        %v1388 = vadd.f32 %v1124, %v1371
        %v1389 = vadd.f32 %v1125, %v1373
        %v1390 = vadd.f32 %v1126, %v1375
        %v1391 = vadd.f32 %v1127, %v1379
        %v1392 = vadd.f32 %v1128, %v1381
        %v1393 = vadd.f32 %v1129, %v1383
        %v1394 = vadd.f32 %v1130, %v1385
        %s1395 = scalar_lea.vmem [#allocation3], 96
        %1396 = vst [vmem:[%s1395 + $0x8] sm:$0xff] %v1391
        %1397 = vst [vmem:[%s1395 + $0x10] sm:$0xff] %v1392
        %1398 = vst [vmem:[%s1395 + $0x20] sm:$0xff] %v1393
        %1399 = vst [vmem:[%s1395 + $0x28] sm:$0xff] %v1394
        %v1400 = vld [vmem:[%s1395] sm:$0xff]
        %v1401 = vld [vmem:[%s1395 + $0x8] sm:$0xff]
        %v1402 = vld [vmem:[%s1395 + $0x10] sm:$0xff]
        %v1403 = vld [vmem:[%s1395 + $0x18] sm:$0xff]
        %v1404 = vld [vmem:[%s1395 + $0x20] sm:$0xff]
        %v1405 = vld [vmem:[%s1395 + $0x28] sm:$0xff]
        %v1406 = vpack.c.bf16 %v1393, %v1391
        %v1407 = vpack.c.bf16 %v1394, %v1392
        %s1408 = scalar_lea.vmem %s6, 32
        %v1409 = vld [vmem:[%s1408] sm:$0xff]
        %v1410 = vld [vmem:[%s1408 + $0x8] sm:$0xff]
        %v1411 = vpack.c.bf16 %v1403, %v1400
        %v1412 = vpack.c.bf16 %v1404, %v1401
        %v1413 = vpack.c.bf16 %v1405, %v1402
        %s1414 = scalar_lea.vmem %s5, 32
        %v1415 = vld [vmem:[%s1414] sm:$0xf]
        %v1416 = vld [vmem:[%s1414 + $0x4] sm:$0xf]
        %v1419 = vunpack.c.l.b16 %v1415
        %v1420 = vunpack.c.l.b16 %v1416
        %v1421 = vpack.c.b16 %v1420, %v1419
        %1425 = vrot.lane.b32.xlu0 %v1411, 4
        %v1426 = vpop.permute.xlu0 %1425
        %1427 = vrot.lane.b32.xlu0 %v1412, 4
        %v1428 = vpop.permute.xlu0 %1427
        %1429 = vrot.lane.b32.xlu0 %v1413, 4
        %v1430 = vpop.permute.xlu0 %1429
        %v1431 = vsel %vm513, %v1426, %v1428
        %v1432 = vsel %vm513, %v1428, %v1430
        %v1436 = vsel %vm824, %v1421, 0
        %1438 = vmatprep.subr.bf16.mxu0 0
        %1439 = vmatpush1.bf16.msra.mxu0 0
        %1440 = vmatprep.subr.bf16.mxu0 0
        %1441 = vmatpush1.bf16.msra.mxu0 0
        %1442 = vmatprep.subr.bf16.mxu0 0
        %1443 = vmatpush1.bf16.msra.mxu0 0
        %1444 = vmatprep.subr.bf16.mxu0 0
        %1445 = vmatpush1.bf16.msra.mxu0 0
        %1446 = vmatprep.subr.bf16.mxu0 0
        %1447 = vmatpush1.bf16.msra.mxu0 0
        %1448 = vmatprep.subr.bf16.mxu0 0
        %1449 = vmatpush1.bf16.msra.mxu0 0
        %1450 = vmatprep.subr.bf16.mxu0 0
        %1451 = vmatpush1.bf16.msra.mxu0 0
        %1452 = vmatprep.subr.bf16.mxu0 %v1432
        %1453 = vmatpush1.bf16.msra.mxu0 %v1431
        %1454 = vmatprep.subr.bf16.mxu0 0
        %1455 = vmatpush2.bf16.msra.mxu0 0
        %1456 = vmatprep.subr.bf16.mxu0 0
        %1457 = vmatpush2.bf16.msra.mxu0 0
        %1458 = vmatprep.subr.bf16.mxu0 0
        %1459 = vmatpush2.bf16.msra.mxu0 0
        %1460 = vmatprep.subr.bf16.mxu0 0
        %1461 = vmatpush2.bf16.msra.mxu0 0
        %1462 = vmatprep.subr.bf16.mxu0 0
        %1463 = vmatpush2.bf16.msra.mxu0 0
        %1464 = vmatprep.subr.bf16.mxu0 0
        %1465 = vmatpush2.bf16.msra.mxu0 0
        %1466 = vmatprep.subr.bf16.mxu0 0
        %1467 = vmatpush2.bf16.msra.mxu0 0
        %1468 = vmatprep.subr.bf16.mxu0 0
        %1469 = vmatpush2.bf16.msra.mxu0 0
        %1470 = vmatprep.mubr.bf16.mxu0 0
        %1471 = vmatmul.mubr.bf16.gmra.mxu0 %v1436
        %v1472 = vpop.f32.mrf.mxu0
        %v1473 = vadd.f32 0.0, %v1472
        %v1474 = vpop.f32.mrf.mxu0
        %v1475 = vadd.f32 0.0, %v1474
        %v1476 = vpop.f32.mrf.mxu0
        %v1477 = vadd.f32 0.0, %v1476
        %v1478 = vpop.f32.mrf.mxu0
        %v1479 = vadd.f32 0.0, %v1478
        %1480 = vdwg.mxu0
        %1482 = vset.pattern.permute.xlu0 0
        %1483 = vperm.xlu0 %1482, %v1409
        %v1484 = vpop.permute.xlu0 %1483
        %1487 = vset.pattern.permute.xlu0 0
        %1488 = vperm.xlu0 %1487, %v1410
        %v1489 = vpop.permute.xlu0 %1488
        %v1491 = vadd.f32 %v1484, %v1473
        %v1492 = vadd.f32 %v1484, %v1475
        %v1493 = vadd.f32 %v1489, %v1477
        %v1494 = vadd.f32 %v1489, %v1479
        %s1495 = scalar_lea.vmem %s5, 40
        %v1496 = vld [vmem:[%s1495] sm:$0xf]
        %v1497 = vld [vmem:[%s1495 + $0x4] sm:$0xf]
        %v1500 = vunpack.c.l.b16 %v1496
        %v1501 = vunpack.c.l.b16 %v1497
        %v1502 = vpack.c.b16 %v1501, %v1500
        %v1504 = vsel %vm824, %v1502, 0
        %1506 = vmatprep.subr.bf16.mxu0 0
        %1507 = vmatpush1.bf16.msra.mxu0 0
        %1508 = vmatprep.subr.bf16.mxu0 0
        %1509 = vmatpush1.bf16.msra.mxu0 0
        %1510 = vmatprep.subr.bf16.mxu0 0
        %1511 = vmatpush1.bf16.msra.mxu0 0
        %1512 = vmatprep.subr.bf16.mxu0 0
        %1513 = vmatpush1.bf16.msra.mxu0 0
        %1514 = vmatprep.subr.bf16.mxu0 0
        %1515 = vmatpush1.bf16.msra.mxu0 0
        %1516 = vmatprep.subr.bf16.mxu0 0
        %1517 = vmatpush1.bf16.msra.mxu0 0
        %1518 = vmatprep.subr.bf16.mxu0 0
        %1519 = vmatpush1.bf16.msra.mxu0 0
        %1520 = vmatprep.subr.bf16.mxu0 %v1407
        %1521 = vmatpush1.bf16.msra.mxu0 %v1406
        %1522 = vmatprep.subr.bf16.mxu0 0
        %1523 = vmatpush2.bf16.msra.mxu0 0
        %1524 = vmatprep.subr.bf16.mxu0 0
        %1525 = vmatpush2.bf16.msra.mxu0 0
        %1526 = vmatprep.subr.bf16.mxu0 0
        %1527 = vmatpush2.bf16.msra.mxu0 0
        %1528 = vmatprep.subr.bf16.mxu0 0
        %1529 = vmatpush2.bf16.msra.mxu0 0
        %1530 = vmatprep.subr.bf16.mxu0 0
        %1531 = vmatpush2.bf16.msra.mxu0 0
        %1532 = vmatprep.subr.bf16.mxu0 0
        %1533 = vmatpush2.bf16.msra.mxu0 0
        %1534 = vmatprep.subr.bf16.mxu0 0
        %1535 = vmatpush2.bf16.msra.mxu0 0
        %1536 = vmatprep.subr.bf16.mxu0 0
        %1537 = vmatpush2.bf16.msra.mxu0 0
        %1538 = vmatprep.mubr.bf16.mxu0 0
        %1539 = vmatmul.mubr.bf16.gmra.mxu0 %v1504
        %v1540 = vpop.f32.mrf.mxu0
        %v1541 = vadd.f32 0.0, %v1540
        %v1542 = vpop.f32.mrf.mxu0
        %v1543 = vadd.f32 0.0, %v1542
        %v1544 = vpop.f32.mrf.mxu0
        %v1545 = vadd.f32 0.0, %v1544
        %v1546 = vpop.f32.mrf.mxu0
        %v1547 = vadd.f32 0.0, %v1546
        %1548 = vdwg.mxu0
        %v1549 = vadd.f32 %v1491, %v1541
        %v1550 = vadd.f32 %v1492, %v1543
        %v1551 = vadd.f32 %v1493, %v1545
        %v1552 = vadd.f32 %v1494, %v1547
        %v1553 = vxor.u32 %v1549, 2147483648
        %v1554 = vxor.u32 %v1550, 2147483648
        %v1555 = vmul.f32 %v1553, 1.442695
        %v1556 = vpow.pop %v1555
        %v1557 = vmul.f32 %v1554, 1.442695
        %v1558 = vpow.pop %v1557
        %v1559 = vadd.f32 %v1556, 1.0
        %v1560 = vadd.f32 %v1558, 1.0
        %v1561 = vrcp.pop %v1559
        %v1562 = vmul.f32 1.0, %v1561
        %v1563 = vrcp.pop %v1560
        %v1564 = vmul.f32 1.0, %v1563
        %v1565 = vtanh.pop %v1551
        %v1566 = vtanh.pop %v1552
        %v1567 = vmul.f32 %v1562, %v1565
        %v1568 = vmul.f32 %v1564, %v1566
        %v1569 = vpack.c.bf16 %v1567, %v1567
        %v1570 = vpack.c.bf16 %v1568, %v1568
        %s1571 = scalar_lea.vmem %s7, 32
        %v1572 = vld [vmem:[%s1571] sm:$0xf]
        %v1573 = vld [vmem:[%s1571 + $0x4] sm:$0xf]
        %v1574 = vld [vmem:[%s1571 + $0x8] sm:$0xf]
        %v1575 = vld [vmem:[%s1571 + $0xc] sm:$0xf]
        %v1580 = vunpack.c.l.b16 %v1572
        %v1581 = vunpack.c.l.b16 %v1573
        %v1582 = vunpack.c.l.b16 %v1574
        %v1583 = vunpack.c.l.b16 %v1575
        %v1584 = vpack.c.b16 %v1581, %v1580
        %v1585 = vpack.c.b16 %v1583, %v1582
        %v1587 = vsel %vm1056, %v1584, 0
        %v1590 = vsel %vm1056, %v1585, 0
        %v1593 = vsel %vm1063, %v1569, 0
        %v1596 = vsel %vm1063, %v1570, 0
        %1598 = vmatprep.subr.bf16.mxu0 0
        %1599 = vmatpush1.bf16.msra.mxu0 0
        %1600 = vmatprep.subr.bf16.mxu0 0
        %1601 = vmatpush1.bf16.msra.mxu0 0
        %1602 = vmatprep.subr.bf16.mxu0 0
        %1603 = vmatpush1.bf16.msra.mxu0 0
        %1604 = vmatprep.subr.bf16.mxu0 0
        %1605 = vmatpush1.bf16.msra.mxu0 0
        %1606 = vmatprep.subr.bf16.mxu0 0
        %1607 = vmatpush1.bf16.msra.mxu0 0
        %1608 = vmatprep.subr.bf16.mxu0 0
        %1609 = vmatpush1.bf16.msra.mxu0 0
        %1610 = vmatprep.subr.bf16.mxu0 0
        %1611 = vmatpush1.bf16.msra.mxu0 0
        %1612 = vmatprep.subr.bf16.mxu0 %v1596
        %1613 = vmatpush1.bf16.msra.mxu0 %v1593
        %1614 = vmatprep.subr.bf16.mxu0 0
        %1615 = vmatpush2.bf16.msra.mxu0 0
        %1616 = vmatprep.subr.bf16.mxu0 0
        %1617 = vmatpush2.bf16.msra.mxu0 0
        %1618 = vmatprep.subr.bf16.mxu0 0
        %1619 = vmatpush2.bf16.msra.mxu0 0
        %1620 = vmatprep.subr.bf16.mxu0 0
        %1621 = vmatpush2.bf16.msra.mxu0 0
        %1622 = vmatprep.subr.bf16.mxu0 0
        %1623 = vmatpush2.bf16.msra.mxu0 0
        %1624 = vmatprep.subr.bf16.mxu0 0
        %1625 = vmatpush2.bf16.msra.mxu0 0
        %1626 = vmatprep.subr.bf16.mxu0 0
        %1627 = vmatpush2.bf16.msra.mxu0 0
        %1628 = vmatprep.subr.bf16.mxu0 0
        %1629 = vmatpush2.bf16.msra.mxu0 0
        %1630 = vmatprep.mubr.bf16.mxu0 0
        %1631 = vmatmul.mubr.bf16.gmra.mxu0 %v1587
        %v1632 = vpop.f32.mrf.mxu0
        %v1633 = vadd.f32 0.0, %v1632
        %v1634 = vpop.f32.mrf.mxu0
        %v1635 = vadd.f32 0.0, %v1634
        %v1636 = vpop.f32.mrf.mxu0
        %v1637 = vadd.f32 0.0, %v1636
        %v1638 = vpop.f32.mrf.mxu0
        %v1639 = vadd.f32 0.0, %v1638
        %1640 = vmatprep.mubr.bf16.mxu0 0
        %1641 = vmatmul.mubr.bf16.gmra.mxu0 %v1590
        %v1642 = vpop.f32.mrf.mxu0
        %v1643 = vadd.f32 0.0, %v1642
        %v1644 = vpop.f32.mrf.mxu0
        %v1645 = vadd.f32 0.0, %v1644
        %v1646 = vpop.f32.mrf.mxu0
        %v1647 = vadd.f32 0.0, %v1646
        %v1648 = vpop.f32.mrf.mxu0
        %v1649 = vadd.f32 0.0, %v1648
        %1650 = vdwg.mxu0
        %v1651 = vadd.f32 %v1387, %v1633
        %v1652 = vadd.f32 %v1388, %v1635
        %v1653 = vadd.f32 %v1389, %v1637
        %v1654 = vadd.f32 %v1390, %v1639
        %v1655 = vadd.f32 %v1391, %v1643
        %v1656 = vadd.f32 %v1392, %v1645
        %v1657 = vadd.f32 %v1393, %v1647
        %v1658 = vadd.f32 %v1394, %v1649
        %s1659 = scalar_lea.vmem [#allocation3], 144
        %1660 = vst [vmem:[%s1659 + $0x8] sm:$0xff] %v1655
        %1661 = vst [vmem:[%s1659 + $0x10] sm:$0xff] %v1656
        %1662 = vst [vmem:[%s1659 + $0x20] sm:$0xff] %v1657
        %1663 = vst [vmem:[%s1659 + $0x28] sm:$0xff] %v1658
        %v1664 = vld [vmem:[%s1659] sm:$0xff]
        %v1665 = vld [vmem:[%s1659 + $0x8] sm:$0xff]
        %v1666 = vld [vmem:[%s1659 + $0x10] sm:$0xff]
        %v1667 = vld [vmem:[%s1659 + $0x18] sm:$0xff]
        %v1668 = vld [vmem:[%s1659 + $0x20] sm:$0xff]
        %v1669 = vld [vmem:[%s1659 + $0x28] sm:$0xff]
        %v1670 = vpack.c.bf16 %v1657, %v1655
        %v1671 = vpack.c.bf16 %v1658, %v1656
        %s1672 = scalar_lea.vmem %s6, 48
        %v1673 = vld [vmem:[%s1672] sm:$0xff]
        %v1674 = vld [vmem:[%s1672 + $0x8] sm:$0xff]
        %v1675 = vpack.c.bf16 %v1667, %v1664
        %v1676 = vpack.c.bf16 %v1668, %v1665
        %v1677 = vpack.c.bf16 %v1669, %v1666
        %s1678 = scalar_lea.vmem %s5, 48
        %v1679 = vld [vmem:[%s1678] sm:$0xf]
        %v1680 = vld [vmem:[%s1678 + $0x4] sm:$0xf]
        %v1683 = vunpack.c.l.b16 %v1679
        %v1684 = vunpack.c.l.b16 %v1680
        %v1685 = vpack.c.b16 %v1684, %v1683
        %1689 = vrot.lane.b32.xlu0 %v1675, 1
        %v1690 = vpop.permute.xlu0 %1689
        %1691 = vrot.lane.b32.xlu0 %v1676, 1
        %v1692 = vpop.permute.xlu0 %1691
        %1693 = vrot.lane.b32.xlu0 %v1677, 1
        %v1694 = vpop.permute.xlu0 %1693
        %v1695 = vsel %vm744, %v1690, %v1692
        %v1696 = vsel %vm744, %v1692, %v1694
        %v1700 = vsel %vm824, %v1685, 0
        %1702 = vmatprep.subr.bf16.mxu0 0
        %1703 = vmatpush1.bf16.msra.mxu0 0
        %1704 = vmatprep.subr.bf16.mxu0 0
        %1705 = vmatpush1.bf16.msra.mxu0 0
        %1706 = vmatprep.subr.bf16.mxu0 0
        %1707 = vmatpush1.bf16.msra.mxu0 0
        %1708 = vmatprep.subr.bf16.mxu0 0
        %1709 = vmatpush1.bf16.msra.mxu0 0
        %1710 = vmatprep.subr.bf16.mxu0 0
        %1711 = vmatpush1.bf16.msra.mxu0 0
        %1712 = vmatprep.subr.bf16.mxu0 0
        %1713 = vmatpush1.bf16.msra.mxu0 0
        %1714 = vmatprep.subr.bf16.mxu0 0
        %1715 = vmatpush1.bf16.msra.mxu0 0
        %1716 = vmatprep.subr.bf16.mxu0 %v1696
        %1717 = vmatpush1.bf16.msra.mxu0 %v1695
        %1718 = vmatprep.subr.bf16.mxu0 0
        %1719 = vmatpush2.bf16.msra.mxu0 0
        %1720 = vmatprep.subr.bf16.mxu0 0
        %1721 = vmatpush2.bf16.msra.mxu0 0
        %1722 = vmatprep.subr.bf16.mxu0 0
        %1723 = vmatpush2.bf16.msra.mxu0 0
        %1724 = vmatprep.subr.bf16.mxu0 0
        %1725 = vmatpush2.bf16.msra.mxu0 0
        %1726 = vmatprep.subr.bf16.mxu0 0
        %1727 = vmatpush2.bf16.msra.mxu0 0
        %1728 = vmatprep.subr.bf16.mxu0 0
        %1729 = vmatpush2.bf16.msra.mxu0 0
        %1730 = vmatprep.subr.bf16.mxu0 0
        %1731 = vmatpush2.bf16.msra.mxu0 0
        %1732 = vmatprep.subr.bf16.mxu0 0
        %1733 = vmatpush2.bf16.msra.mxu0 0
        %1734 = vmatprep.mubr.bf16.mxu0 0
        %1735 = vmatmul.mubr.bf16.gmra.mxu0 %v1700
        %v1736 = vpop.f32.mrf.mxu0
        %v1737 = vadd.f32 0.0, %v1736
        %v1738 = vpop.f32.mrf.mxu0
        %v1739 = vadd.f32 0.0, %v1738
        %v1740 = vpop.f32.mrf.mxu0
        %v1741 = vadd.f32 0.0, %v1740
        %v1742 = vpop.f32.mrf.mxu0
        %v1743 = vadd.f32 0.0, %v1742
        %1744 = vdwg.mxu0
        %1746 = vset.pattern.permute.xlu0 0
        %1747 = vperm.xlu0 %1746, %v1673
        %v1748 = vpop.permute.xlu0 %1747
        %1751 = vset.pattern.permute.xlu0 0
        %1752 = vperm.xlu0 %1751, %v1674
        %v1753 = vpop.permute.xlu0 %1752
        %v1755 = vadd.f32 %v1748, %v1737
        %v1756 = vadd.f32 %v1748, %v1739
        %v1757 = vadd.f32 %v1753, %v1741
        %v1758 = vadd.f32 %v1753, %v1743
        %s1759 = scalar_lea.vmem %s5, 56
        %v1760 = vld [vmem:[%s1759] sm:$0xf]
        %v1761 = vld [vmem:[%s1759 + $0x4] sm:$0xf]
        %v1764 = vunpack.c.l.b16 %v1760
        %v1765 = vunpack.c.l.b16 %v1761
        %v1766 = vpack.c.b16 %v1765, %v1764
        %v1768 = vsel %vm824, %v1766, 0
        %1770 = vmatprep.subr.bf16.mxu0 0
        %1771 = vmatpush1.bf16.msra.mxu0 0
        %1772 = vmatprep.subr.bf16.mxu0 0
        %1773 = vmatpush1.bf16.msra.mxu0 0
        %1774 = vmatprep.subr.bf16.mxu0 0
        %1775 = vmatpush1.bf16.msra.mxu0 0
        %1776 = vmatprep.subr.bf16.mxu0 0
        %1777 = vmatpush1.bf16.msra.mxu0 0
        %1778 = vmatprep.subr.bf16.mxu0 0
        %1779 = vmatpush1.bf16.msra.mxu0 0
        %1780 = vmatprep.subr.bf16.mxu0 0
        %1781 = vmatpush1.bf16.msra.mxu0 0
        %1782 = vmatprep.subr.bf16.mxu0 0
        %1783 = vmatpush1.bf16.msra.mxu0 0
        %1784 = vmatprep.subr.bf16.mxu0 %v1671
        %1785 = vmatpush1.bf16.msra.mxu0 %v1670
        %1786 = vmatprep.subr.bf16.mxu0 0
        %1787 = vmatpush2.bf16.msra.mxu0 0
        %1788 = vmatprep.subr.bf16.mxu0 0
        %1789 = vmatpush2.bf16.msra.mxu0 0
        %1790 = vmatprep.subr.bf16.mxu0 0
        %1791 = vmatpush2.bf16.msra.mxu0 0
        %1792 = vmatprep.subr.bf16.mxu0 0
        %1793 = vmatpush2.bf16.msra.mxu0 0
        %1794 = vmatprep.subr.bf16.mxu0 0
        %1795 = vmatpush2.bf16.msra.mxu0 0
        %1796 = vmatprep.subr.bf16.mxu0 0
        %1797 = vmatpush2.bf16.msra.mxu0 0
        %1798 = vmatprep.subr.bf16.mxu0 0
        %1799 = vmatpush2.bf16.msra.mxu0 0
        %1800 = vmatprep.subr.bf16.mxu0 0
        %1801 = vmatpush2.bf16.msra.mxu0 0
        %1802 = vmatprep.mubr.bf16.mxu0 0
        %1803 = vmatmul.mubr.bf16.gmra.mxu0 %v1768
        %v1804 = vpop.f32.mrf.mxu0
        %v1805 = vadd.f32 0.0, %v1804
        %v1806 = vpop.f32.mrf.mxu0
        %v1807 = vadd.f32 0.0, %v1806
        %v1808 = vpop.f32.mrf.mxu0
        %v1809 = vadd.f32 0.0, %v1808
        %v1810 = vpop.f32.mrf.mxu0
        %v1811 = vadd.f32 0.0, %v1810
        %1812 = vdwg.mxu0
        %v1813 = vadd.f32 %v1755, %v1805
        %v1814 = vadd.f32 %v1756, %v1807
        %v1815 = vadd.f32 %v1757, %v1809
        %v1816 = vadd.f32 %v1758, %v1811
        %v1817 = vxor.u32 %v1813, 2147483648
        %v1818 = vxor.u32 %v1814, 2147483648
        %v1819 = vmul.f32 %v1817, 1.442695
        %v1820 = vpow.pop %v1819
        %v1821 = vmul.f32 %v1818, 1.442695
        %v1822 = vpow.pop %v1821
        %v1823 = vadd.f32 %v1820, 1.0
        %v1824 = vadd.f32 %v1822, 1.0
        %v1825 = vrcp.pop %v1823
        %v1826 = vmul.f32 1.0, %v1825
        %v1827 = vrcp.pop %v1824
        %v1828 = vmul.f32 1.0, %v1827
        %v1829 = vtanh.pop %v1815
        %v1830 = vtanh.pop %v1816
        %v1831 = vmul.f32 %v1826, %v1829
        %v1832 = vmul.f32 %v1828, %v1830
        %v1833 = vpack.c.bf16 %v1831, %v1831
        %v1834 = vpack.c.bf16 %v1832, %v1832
        %s1835 = scalar_lea.vmem %s7, 48
        %v1836 = vld [vmem:[%s1835] sm:$0xf]
        %v1837 = vld [vmem:[%s1835 + $0x4] sm:$0xf]
        %v1840 = vunpack.c.l.b16 %v1836
        %v1841 = vunpack.c.l.b16 %v1837
        %v1842 = vpack.c.b16 %v1841, %v1840
        %v1844 = vsel %vm1056, %v1842, 0
        %v1847 = vsel %vm1063, %v1833, 0
        %v1850 = vsel %vm1063, %v1834, 0
        %1852 = vmatprep.subr.bf16.mxu0 0
        %1853 = vmatpush1.bf16.msra.mxu0 0
        %1854 = vmatprep.subr.bf16.mxu0 0
        %1855 = vmatpush1.bf16.msra.mxu0 0
        %1856 = vmatprep.subr.bf16.mxu0 0
        %1857 = vmatpush1.bf16.msra.mxu0 0
        %1858 = vmatprep.subr.bf16.mxu0 0
        %1859 = vmatpush1.bf16.msra.mxu0 0
        %1860 = vmatprep.subr.bf16.mxu0 0
        %1861 = vmatpush1.bf16.msra.mxu0 0
        %1862 = vmatprep.subr.bf16.mxu0 0
        %1863 = vmatpush1.bf16.msra.mxu0 0
        %1864 = vmatprep.subr.bf16.mxu0 0
        %1865 = vmatpush1.bf16.msra.mxu0 0
        %1866 = vmatprep.subr.bf16.mxu0 %v1850
        %1867 = vmatpush1.bf16.msra.mxu0 %v1847
        %1868 = vmatprep.subr.bf16.mxu0 0
        %1869 = vmatpush2.bf16.msra.mxu0 0
        %1870 = vmatprep.subr.bf16.mxu0 0
        %1871 = vmatpush2.bf16.msra.mxu0 0
        %1872 = vmatprep.subr.bf16.mxu0 0
        %1873 = vmatpush2.bf16.msra.mxu0 0
        %1874 = vmatprep.subr.bf16.mxu0 0
        %1875 = vmatpush2.bf16.msra.mxu0 0
        %1876 = vmatprep.subr.bf16.mxu0 0
        %1877 = vmatpush2.bf16.msra.mxu0 0
        %1878 = vmatprep.subr.bf16.mxu0 0
        %1879 = vmatpush2.bf16.msra.mxu0 0
        %1880 = vmatprep.subr.bf16.mxu0 0
        %1881 = vmatpush2.bf16.msra.mxu0 0
        %1882 = vmatprep.subr.bf16.mxu0 0
        %1883 = vmatpush2.bf16.msra.mxu0 0
        %1884 = vmatprep.mubr.bf16.mxu0 0
        %1885 = vmatmul.mubr.bf16.gmra.mxu0 %v1844
        %v1886 = vpop.f32.mrf.mxu0
        %v1887 = vadd.f32 0.0, %v1886
        %v1888 = vpop.f32.mrf.mxu0
        %v1889 = vadd.f32 0.0, %v1888
        %v1890 = vpop.f32.mrf.mxu0
        %v1891 = vadd.f32 0.0, %v1890
        %v1892 = vpop.f32.mrf.mxu0
        %v1893 = vadd.f32 0.0, %v1892
        %1894 = vdwg.mxu0
        %v1895 = vadd.f32 %v1651, %v1887
        %v1896 = vadd.f32 %v1652, %v1889
        %v1897 = vadd.f32 %v1653, %v1891
        %v1898 = vadd.f32 %v1654, %v1893
        %v1899 = vmax.f32 %v1895, 0.0
        %v1900 = vmax.f32 %v1896, 0.0
        %v1901 = vmax.f32 %v1897, 0.0
        %v1902 = vmax.f32 %v1898, 0.0
        %v1903 = vld [vmem:[%s8] sm:$0xf]
        %v1904 = vld [vmem:[%s8 + $0x4] sm:$0xf]
        %v1905 = vpack.c.bf16 %v1901, %v1899
        %v1906 = vpack.c.bf16 %v1902, %v1900
        %v1907 = vld [vmem:[%s9] sm:$0xff]
        %v1908 = vld [vmem:[%s9 + $0x8] sm:$0xff]
        %1910 = vset.pattern.permute.xlu0 0
        %1911 = vperm.xlu0 %1910, %v1907
        %v1912 = vpop.permute.xlu0 %1911
        %1915 = vset.pattern.permute.xlu0 0
        %1916 = vperm.xlu0 %1915, %v1908
        %v1917 = vpop.permute.xlu0 %1916
        %v1921 = vunpack.c.l.b16 %v1903
        %v1922 = vunpack.c.l.b16 %v1904
        %v1923 = vpack.c.b16 %v1922, %v1921
        %v1925 = vsel %vm824, %v1923, 0
        %1927 = vmatprep.subr.bf16.mxu0 0
        %1928 = vmatpush1.bf16.msra.mxu0 0
        %1929 = vmatprep.subr.bf16.mxu0 0
        %1930 = vmatpush1.bf16.msra.mxu0 0
        %1931 = vmatprep.subr.bf16.mxu0 0
        %1932 = vmatpush1.bf16.msra.mxu0 0
        %1933 = vmatprep.subr.bf16.mxu0 0
        %1934 = vmatpush1.bf16.msra.mxu0 0
        %1935 = vmatprep.subr.bf16.mxu0 0
        %1936 = vmatpush1.bf16.msra.mxu0 0
        %1937 = vmatprep.subr.bf16.mxu0 0
        %1938 = vmatpush1.bf16.msra.mxu0 0
        %1939 = vmatprep.subr.bf16.mxu0 0
        %1940 = vmatpush1.bf16.msra.mxu0 0
        %1941 = vmatprep.subr.bf16.mxu0 %v1906
        %1942 = vmatpush1.bf16.msra.mxu0 %v1905
        %1943 = vmatprep.subr.bf16.mxu0 0
        %1944 = vmatpush2.bf16.msra.mxu0 0
        %1945 = vmatprep.subr.bf16.mxu0 0
        %1946 = vmatpush2.bf16.msra.mxu0 0
        %1947 = vmatprep.subr.bf16.mxu0 0
        %1948 = vmatpush2.bf16.msra.mxu0 0
        %1949 = vmatprep.subr.bf16.mxu0 0
        %1950 = vmatpush2.bf16.msra.mxu0 0
        %1951 = vmatprep.subr.bf16.mxu0 0
        %1952 = vmatpush2.bf16.msra.mxu0 0
        %1953 = vmatprep.subr.bf16.mxu0 0
        %1954 = vmatpush2.bf16.msra.mxu0 0
        %1955 = vmatprep.subr.bf16.mxu0 0
        %1956 = vmatpush2.bf16.msra.mxu0 0
        %1957 = vmatprep.subr.bf16.mxu0 0
        %1958 = vmatpush2.bf16.msra.mxu0 0
        %1959 = vmatprep.mubr.bf16.mxu0 0
        %1960 = vmatmul.mubr.bf16.gmra.mxu0 %v1925
        %v1961 = vpop.f32.mrf.mxu0
        %v1962 = vadd.f32 %v1912, %v1961
        %v1963 = vpop.f32.mrf.mxu0
        %v1964 = vadd.f32 %v1912, %v1963
        %v1965 = vpop.f32.mrf.mxu0
        %v1966 = vadd.f32 %v1917, %v1965
        %v1967 = vpop.f32.mrf.mxu0
        %v1968 = vadd.f32 %v1917, %v1967
        %1969 = vdwg.mxu0
        %v1970 = vmax.f32 %v1962, 0.0
        %v1971 = vmax.f32 %v1964, 0.0
        %v1972 = vmax.f32 %v1966, 0.0
        %v1973 = vmax.f32 %v1968, 0.0
        %v1974 = vld [vmem:[%s10] sm:$0xf]
        %v1975 = vpack.c.bf16 %v1972, %v1970
        %v1976 = vpack.c.bf16 %v1973, %v1971
        %v1977 = vld [vmem:[%s11] sm:$0xff]
        %1979 = vset.pattern.permute.xlu0 0
        %1980 = vperm.xlu0 %1979, %v1977
        %v1981 = vpop.permute.xlu0 %1980
        %v1984 = vsel %vm824, %v1974, 0
        %1986 = vmatprep.subr.bf16.mxu0 0
        %1987 = vmatpush1.bf16.msra.mxu0 0
        %1988 = vmatprep.subr.bf16.mxu0 0
        %1989 = vmatpush1.bf16.msra.mxu0 0
        %1990 = vmatprep.subr.bf16.mxu0 0
        %1991 = vmatpush1.bf16.msra.mxu0 0
        %1992 = vmatprep.subr.bf16.mxu0 0
        %1993 = vmatpush1.bf16.msra.mxu0 0
        %1994 = vmatprep.subr.bf16.mxu0 0
        %1995 = vmatpush1.bf16.msra.mxu0 0
        %1996 = vmatprep.subr.bf16.mxu0 0
        %1997 = vmatpush1.bf16.msra.mxu0 0
        %1998 = vmatprep.subr.bf16.mxu0 0
        %1999 = vmatpush1.bf16.msra.mxu0 0
        %2000 = vmatprep.subr.bf16.mxu0 %v1976
        %2001 = vmatpush1.bf16.msra.mxu0 %v1975
        %2002 = vmatprep.subr.bf16.mxu0 0
        %2003 = vmatpush2.bf16.msra.mxu0 0
        %2004 = vmatprep.subr.bf16.mxu0 0
        %2005 = vmatpush2.bf16.msra.mxu0 0
        %2006 = vmatprep.subr.bf16.mxu0 0
        %2007 = vmatpush2.bf16.msra.mxu0 0
        %2008 = vmatprep.subr.bf16.mxu0 0
        %2009 = vmatpush2.bf16.msra.mxu0 0
        %2010 = vmatprep.subr.bf16.mxu0 0
        %2011 = vmatpush2.bf16.msra.mxu0 0
        %2012 = vmatprep.subr.bf16.mxu0 0
        %2013 = vmatpush2.bf16.msra.mxu0 0
        %2014 = vmatprep.subr.bf16.mxu0 0
        %2015 = vmatpush2.bf16.msra.mxu0 0
        %2016 = vmatprep.subr.bf16.mxu0 0
        %2017 = vmatpush2.bf16.msra.mxu0 0
        %2018 = vmatprep.mubr.bf16.mxu0 0
        %2019 = vmatmul.mubr.bf16.gmra.mxu0 %v1984
        %v2020 = vpop.f32.mrf.mxu0
        %v2021 = vadd.f32 %v1981, %v2020
        %v2022 = vpop.f32.mrf.mxu0
        %v2023 = vadd.f32 %v1981, %v2022
        %v2024 = vpop.f32.mrf.mxu0
        %v2025 = vpop.f32.mrf.mxu0
        %2026 = vdwg.mxu0
        %2027 = vst [vmem:[%s431] sm:$0xff] %v2021
        %2028 = vst [vmem:[%s431 + $0x8] sm:$0xff] %v2023
        %s2029 = sand.u32 %s307, 1
        %s2030 = scalar_lea.sflag [#allocation5], %s2029
        %s2031 = sand.u32 %s307, 1
        %s2032 = smul.addr %s2031, 16
        %s2033 = scalar_lea.vmem [#allocation4], %s2032
        // Predicated region
        $region77: #{tpu_custom_call.1} parent=67 // pred_check
          %p2034 = pneg %p317
        $region78: #{tpu_custom_call.1} parent=67 // pred_check_branch
          %2036 = sbr.rel (%p2034) target = $region80
        $region79: #{tpu_custom_call.1} parent=67 // pred_region
          %s2037 = smul.u32 2, %s31
          %s2039 = ssub.s32 256, 256
          %2040 = vsyncadd %s2030, %s2039
          %s2041 = smul.addr %s30, 2
          %s2042 = sadd.s32 %s2037, %s2041
          %s2043 = smul.addr %s2042, 128
          %s2044 = scalar_lea.hbm %s12, %s2043
          %s2046 = sshll.u32 %s2033, 4
          %s2047 = int_to_ptr.vmem [resolvable:$true] %s2046
          %2049 = dma.vmem_to_hbm [thread:$0]  %s2047, 256, %s2044, %s2030
        $region80: #{tpu_custom_call.1} parent=67 // pred_fallthru
          _
      $region68: #{tpu_custom_call.1} parent=5 // pred_fallthru
        _
      %p2050 = scmp.le.s32.totalorder 2, %s21
      // Predicated region
      $region81: #{tpu_custom_call.1} parent=5 // pred_check
        %p2051 = pneg %p2050
      $region82: #{tpu_custom_call.1} parent=5 // pred_check_branch
        %2053 = sbr.rel (%p2051) target = $region84
      $region83: #{tpu_custom_call.1} parent=5 // pred_region
        %s2054 = ssub.s32 %s21, 2
        // Predicated region
        $region85: #{tpu_custom_call.1} parent=83 // pred_check
          %p2055 = pneg %p323
        $region86: #{tpu_custom_call.1} parent=83 // pred_check_branch
          %2057 = sbr.rel (%p2055) target = $region88
        $region87: #{tpu_custom_call.1} parent=83 // pred_region
          %s2058 = sand.u32 %s308, 1
          %s2059 = scalar_lea.sflag [#allocation5], %s2058
          %s2060 = sand.u32 %s308, 1
          %s2061 = smul.addr %s2060, 16
          %s2062 = scalar_lea.vmem [#allocation4], %s2061
          %2063 = dma.done %s2059, 256
        $region88: #{tpu_custom_call.1} parent=83 // pred_fallthru
          _
      $region84: #{tpu_custom_call.1} parent=5 // pred_fallthru
        _
    $region6: #{tpu_custom_call.1} parent=1 // loop_footer
      %s25 = sadd.s32 1, %s21
    $region7: #{tpu_custom_call.1} parent=1 // loop_footer_branch
      %20 = sbr.rel target = $region3
    $region8: #{tpu_custom_call.1} parent=1 // loop_exit
      _
    %2064 = vsyncpa [#allocation5], 1
    %s2065 = scalar_lea.sflag [#allocation5], 1
    %2066 = vsyncpa %s2065, 1

</llo_original>
